<compile_context>
chip_gen: v7x
topology: tpu7x:2x2x1
jax: 0.10.0
libtpu: 0.0.40
codegen_flags: <defaults>
</compile_context>

<pallas_src>
import jax
import jax.numpy as jnp
from jax.experimental import pallas as pl
from jax.experimental.pallas import tpu as pltpu  # noqa: F401  (TPU backend)

# ---------------- model hyperparameters (small, consistent with module) -----
VOCAB = 50
B = 2              # batch
T = 8              # sequence length
E = 32             # embedding_dim
H = 32             # hidden_dim
N_LAYERS = 2
FC1, FC2, OUT = 64, 16, 1
H2 = 2 * H         # concatenated two-layer state width
G8 = 8 * H         # combined gate width (2 layers x 4 gates)


# --------------------------- fused LSTM + head kernel ------------------------
def fused_lstm_kernel(x_ref,                       # (T*B, E)   time-major rows
                      h0_ref, c0_ref,              # (L, B, H)  initial state
                      wih_ref,                     # (E, 8H)    layer-0 x proj (interleaved)
                      bcomb_ref,                   # (1, 8H)    combined biases
                      whh_ref,                     # (2H, 8H)   combined recurrent weights
                      fw1_ref, fb1_ref,            # (H, FC1), (1, FC1)
                      fw2_ref, fb2_ref,            # (FC1, FC2), (1, FC2)
                      fw3_ref, fb3_ref,            # (FC2, OUT), (1, OUT)
                      sig_ref, hN_ref, cN_ref):    # (B, OUT), (L,B,H), (L,B,H)
    f32 = jnp.float32

    # Hoisted layer-0 input projection over ALL timesteps at once (biases
    # for both layers folded into the interleaved 8H layout).
    xproj = (jnp.dot(x_ref[...], wih_ref[...], preferred_element_type=f32)
             + bcomb_ref[...])                     # (T*B, 8H)
    whh = whh_ref[...]                             # (2H, 8H)
    bcomb = bcomb_ref[...]                         # (1, 8H)

    # Lane-concatenated state: [layer-0 | layer-1], each H wide.
    h_cat = jnp.concatenate([h0_ref[0], h0_ref[1]], axis=1)   # (B, 2H)
    c_cat = jnp.concatenate([c0_ref[0], c0_ref[1]], axis=1)   # (B, 2H)

    def step(gates, c_prev):
        # Full-width nonlinearities (one sigmoid + one tanh over 8H lanes),
        # then joint i/f/g/o slices covering BOTH layers at once.
        sg = jax.nn.sigmoid(gates)
        tg = jnp.tanh(gates)
        i = sg[:, 0 * H2:1 * H2]
        f = sg[:, 1 * H2:2 * H2]
        g = tg[:, 2 * H2:3 * H2]
        o = sg[:, 3 * H2:4 * H2]
        c_new = f * c_prev + i * g
        h_new = o * jnp.tanh(c_new)
        return h_new, c_new

    # ---- prologue (wavefront step 0): only the layer-0 half is valid -------
    g0 = jnp.dot(h_cat, whh, preferred_element_type=f32) + xproj[0:B, :]
    h_new, c_new = step(g0, c_cat)
    h_cat = jnp.concatenate([h_new[:, :H], h_cat[:, H:]], axis=1)
    c_cat = jnp.concatenate([c_new[:, :H], c_cat[:, H:]], axis=1)

    # ---- main wavefront: layer-0 @ step s and layer-1 @ step s-1 in ONE
    #      matmul per iteration (statically unrolled, tiny live state) -------
    for s in range(1, T):
        g = jnp.dot(h_cat, whh, preferred_element_type=f32) + xproj[s * B:(s + 1) * B, :]
        h_cat, c_cat = step(g, c_cat)

    # ---- epilogue: only the layer-1 half is valid (layer-0 half discarded) -
    g = jnp.dot(h_cat, whh, preferred_element_type=f32) + bcomb
    h_new, c_new = step(g, c_cat)
    h_cat = jnp.concatenate([h_cat[:, :H], h_new[:, H:]], axis=1)
    c_cat = jnp.concatenate([c_cat[:, :H], c_new[:, H:]], axis=1)

    # ---- fused FC head on last timestep layer-1 hidden (== sig[:, -1]) -----
    hlast = h_cat[:, H:]
    z = jnp.dot(hlast, fw1_ref[...], preferred_element_type=f32) + fb1_ref[...]
    z = jnp.dot(z, fw2_ref[...], preferred_element_type=f32) + fb2_ref[...]
    z = jnp.dot(z, fw3_ref[...], preferred_element_type=f32) + fb3_ref[...]
    sig_ref[...] = jax.nn.sigmoid(z).astype(sig_ref.dtype)

    # ---- final hidden / cell states per layer -------------------------------
    hN_ref[0] = h_cat[:, :H].astype(hN_ref.dtype)
    hN_ref[1] = h_cat[:, H:].astype(hN_ref.dtype)
    cN_ref[0] = c_cat[:, :H].astype(cN_ref.dtype)
    cN_ref[1] = c_cat[:, H:].astype(cN_ref.dtype)


def run_fused(x_tm2d, h0, c0, comb_params, fc_params):
    out_shapes = (
        jax.ShapeDtypeStruct((B, OUT), jnp.float32),
        jax.ShapeDtypeStruct((N_LAYERS, B, H), jnp.float32),
        jax.ShapeDtypeStruct((N_LAYERS, B, H), jnp.float32),
    )
    # Single invocation, no grid: every operand is a full-array VMEM block
    # (total resident bytes << VMEM), so no BlockSpecs / pipelining needed.
    return pl.pallas_call(
        fused_lstm_kernel,
        out_shape=out_shapes,
    )(x_tm2d, h0, c0, *comb_params, *fc_params)


# --------------------------- full forward -----------------------------------
@jax.jit
def sentimental_lstm_forward(x_ids, hidden, emb_table, comb_params, fc_params):
    h0, c0 = hidden
    # embedding lookup (glue): (B, T) -> (B, T, E)
    emb = emb_table[x_ids]
    # time-major rows: row t*B + b corresponds to (t, b)
    x_tm2d = jnp.transpose(emb, (1, 0, 2)).reshape(T * B, E)
    sig, hN, cN = run_fused(x_tm2d, h0, c0, comb_params, fc_params)
    sig_out = sig[:, 0]                             # (B,), last-timestep head
    return sig_out, (hN, cN)


# --------------------- parameter init (torch layout) -------------------------
def init_torch_like_params(key):
    ks = jax.random.split(key, 15)
    s = 0.1
    emb_table = jax.random.normal(ks[0], (VOCAB, E), jnp.float32) * s
    # LSTM layer 0 (torch layout: W (4H, in), gate order i,f,g,o)
    wih0 = jax.random.normal(ks[1], (4 * H, E), jnp.float32) * s
    whh0 = jax.random.normal(ks[2], (4 * H, H), jnp.float32) * s
    bih0 = jax.random.normal(ks[3], (4 * H,), jnp.float32) * s
    bhh0 = jax.random.normal(ks[4], (4 * H,), jnp.float32) * s
    # LSTM layer 1 (input size = H)
    wih1 = jax.random.normal(ks[5], (4 * H, H), jnp.float32) * s
    whh1 = jax.random.normal(ks[6], (4 * H, H), jnp.float32) * s
    bih1 = jax.random.normal(ks[7], (4 * H,), jnp.float32) * s
    bhh1 = jax.random.normal(ks[8], (4 * H,), jnp.float32) * s
    # FC head (torch Linear weight is (out, in))
    fw1 = jax.random.normal(ks[9], (FC1, H), jnp.float32) * s
    fb1 = jax.random.normal(ks[10], (FC1,), jnp.float32) * s
    fw2 = jax.random.normal(ks[11], (FC2, FC1), jnp.float32) * s
    fb2 = jax.random.normal(ks[12], (FC2,), jnp.float32) * s
    fw3 = jax.random.normal(ks[13], (OUT, FC2), jnp.float32) * s
    fb3 = jax.random.normal(ks[14], (OUT,), jnp.float32) * s
    lstm = (wih0, whh0, bih0, bhh0, wih1, whh1, bih1, bhh1)
    fc = (fw1, fb1, fw2, fb2, fw3, fb3)
    return emb_table, lstm, fc


def build_combined(wih0, whh0, bih0, bhh0, wih1, whh1, bih1, bhh1):
    """Build wavefront-fused weights.

    Combined column layout (8H wide), gate-major / layer-interleaved:
        [ i0 | i1 | f0 | f1 | g0 | g1 | o0 | o1 ]   (each block H wide)
    Row layout of whh_comb (2H): rows 0:H take layer-0 hidden, rows H:2H take
    layer-1 hidden.  Layer-1 "input" is the layer-0 hidden of the same
    wavefront step, so W_ih1 lands in the top rows of the layer-1 columns.
    """
    wih0T, whh0T = wih0.T, whh0.T          # (E, 4H), (H, 4H)
    wih1T, whh1T = wih1.T, whh1.T          # (H, 4H), (H, 4H)
    b0 = bih0 + bhh0
    b1 = bih1 + bhh1

    def gslice(w, gi):
        return w[:, gi * H:(gi + 1) * H]

    zeroE = jnp.zeros((E, H), jnp.float32)
    zeroH = jnp.zeros((H, H), jnp.float32)

    wih0_wide = jnp.concatenate(
        [jnp.concatenate([gslice(wih0T, gi), zeroE], axis=1) for gi in range(4)],
        axis=1)                                                     # (E, 8H)
    whh_top = jnp.concatenate(
        [jnp.concatenate([gslice(whh0T, gi), gslice(wih1T, gi)], axis=1)
         for gi in range(4)], axis=1)                               # (H, 8H)
    whh_bot = jnp.concatenate(
        [jnp.concatenate([zeroH, gslice(whh1T, gi)], axis=1)
         for gi in range(4)], axis=1)                               # (H, 8H)
    whh_comb = jnp.concatenate([whh_top, whh_bot], axis=0)          # (2H, 8H)
    b_comb = jnp.concatenate(
        [jnp.concatenate([b0[gi * H:(gi + 1) * H], b1[gi * H:(gi + 1) * H]])
         for gi in range(4)]).reshape(1, -1)                        # (1, 8H)
    return wih0_wide, b_comb, whh_comb


def pack_kernel_params(lstm, fc):
    comb = build_combined(*lstm)
    fw1, fb1, fw2, fb2, fw3, fb3 = fc
    fc_k = (fw1.T, fb1.reshape(1, -1),
            fw2.T, fb2.reshape(1, -1),
            fw3.T, fb3.reshape(1, -1))
    return comb, fc_k


# --------------------------- pure-JAX reference ------------------------------
@jax.jit
def reference_forward(x_ids, hidden, emb_table, lstm, fc):
    (wih0, whh0, bih0, bhh0, wih1, whh1, bih1, bhh1) = lstm
    (fw1, fb1, fw2, fb2, fw3, fb3) = fc
    h0, c0 = hidden
    emb = emb_table[x_ids]                           # (B, T, E)

    def cell(x, h, c, wih, whh, bih, bhh):
        gates = x @ wih.T + h @ whh.T + bih + bhh
        i = jax.nn.sigmoid(gates[:, 0 * H:1 * H])
        f = jax.nn.sigmoid(gates[:, 1 * H:2 * H])
        g = jnp.tanh(gates[:, 2 * H:3 * H])
        o = jax.nn.sigmoid(gates[:, 3 * H:4 * H])
        c_new = f * c + i * g
        h_new = o * jnp.tanh(c_new)
        return h_new, c_new

    a, ca = h0[0], c0[0]
    b, cb = h0[1], c0[1]
    for t in range(T):
        a, ca = cell(emb[:, t, :], a, ca, wih0, whh0, bih0, bhh0)
        b, cb = cell(a, b, cb, wih1, whh1, bih1, bhh1)
    z = b @ fw1.T + fb1
    z = z @ fw2.T + fb2
    z = z @ fw3.T + fb3
    sig = jax.nn.sigmoid(z)[:, 0]
    return sig, (jnp.stack([a, b]), jnp.stack([ca, cb]))


# --------------------------- main --------------------------------------------
if __name__ == "__main__":
    key = jax.random.PRNGKey(0)
    k_in, k_par = jax.random.split(key)
    x_ids = jax.random.randint(k_in, (B, T), 0, VOCAB, dtype=jnp.int32)
    emb_table, lstm, fc = init_torch_like_params(k_par)
    comb_params, fc_k = pack_kernel_params(lstm, fc)

    # init_hidden: zeros of shape (n_layers, batch, hidden_dim)
    hidden = (jnp.zeros((N_LAYERS, B, H), jnp.float32),
              jnp.zeros((N_LAYERS, B, H), jnp.float32))

    sig_out, (hN, cN) = sentimental_lstm_forward(
        x_ids, hidden, emb_table, comb_params, fc_k)
    jax.block_until_ready((sig_out, hN, cN))

    # correctness vs pure-JAX reference of the torch module semantics
    ref_sig, (ref_hN, ref_cN) = reference_forward(x_ids, hidden, emb_table, lstm, fc)
    jax.block_until_ready((ref_sig, ref_hN, ref_cN))

    assert sig_out.shape == (B,)
    assert hN.shape == (N_LAYERS, B, H) and cN.shape == (N_LAYERS, B, H)
    assert bool(jnp.all(jnp.isfinite(sig_out)))
    assert bool(jnp.allclose(sig_out, ref_sig, atol=1e-5, rtol=1e-4))
    assert bool(jnp.allclose(hN, ref_hN, atol=1e-5, rtol=1e-4))
    assert bool(jnp.allclose(cN, ref_cN, atol=1e-5, rtol=1e-4))
    print("KERNEL_OK")
</pallas_src>

<mosaic_0001>
module attributes {stable_mosaic.version = 11 : i64} {
  func.func @fused_lstm_kernel(%arg0: memref<16x32xf32, #tpu.memory_space<vmem>>, %arg1: memref<2x2x32xf32, #tpu.memory_space<vmem>>, %arg2: memref<2x2x32xf32, #tpu.memory_space<vmem>>, %arg3: memref<32x256xf32, #tpu.memory_space<vmem>>, %arg4: memref<1x256xf32, #tpu.memory_space<vmem>>, %arg5: memref<64x256xf32, #tpu.memory_space<vmem>>, %arg6: memref<32x64xf32, #tpu.memory_space<vmem>>, %arg7: memref<1x64xf32, #tpu.memory_space<vmem>>, %arg8: memref<64x16xf32, #tpu.memory_space<vmem>>, %arg9: memref<1x16xf32, #tpu.memory_space<vmem>>, %arg10: memref<16x1xf32, #tpu.memory_space<vmem>>, %arg11: memref<1x1xf32, #tpu.memory_space<vmem>>, %arg12: memref<2x1xf32, #tpu.memory_space<vmem>>, %arg13: memref<2x2x32xf32, #tpu.memory_space<vmem>>, %arg14: memref<2x2x32xf32, #tpu.memory_space<vmem>>) attributes {dimension_semantics = [], scalar_prefetch = 0 : i64, scratch_operands = 0 : i64, tpu.core_type = #tpu.core_type<tc>} {
    %c0 = arith.constant 0 : index
    %c0_0 = arith.constant 0 : index
    %0 = vector.load %arg0[%c0, %c0_0] : memref<16x32xf32, #tpu.memory_space<vmem>>, vector<16x32xf32>
    %c0_1 = arith.constant 0 : index
    %c0_2 = arith.constant 0 : index
    %1 = vector.load %arg3[%c0_1, %c0_2] : memref<32x256xf32, #tpu.memory_space<vmem>>, vector<32x256xf32>
    %cst = arith.constant dense<0.000000e+00> : vector<16x256xf32>
    %2 = tpu.matmul %0, %1, %cst {dimension_numbers = #tpu.dot_dimension_numbers<[1], [0], [0], [1], [0, 0, 1, 1], [], []>} : vector<16x32xf32>, vector<32x256xf32>, vector<16x256xf32> -> vector<16x256xf32>
    %c0_3 = arith.constant 0 : index
    %c0_4 = arith.constant 0 : index
    %3 = vector.load %arg4[%c0_3, %c0_4] : memref<1x256xf32, #tpu.memory_space<vmem>>, vector<1x256xf32>
    %4 = vector.broadcast %3 : vector<1x256xf32> to vector<16x256xf32>
    %5 = arith.addf %2, %4 : vector<16x256xf32>
    %c0_5 = arith.constant 0 : index
    %c0_6 = arith.constant 0 : index
    %6 = vector.load %arg5[%c0_5, %c0_6] : memref<64x256xf32, #tpu.memory_space<vmem>>, vector<64x256xf32>
    %c0_7 = arith.constant 0 : index
    %c0_8 = arith.constant 0 : index
    %7 = vector.load %arg4[%c0_7, %c0_8] : memref<1x256xf32, #tpu.memory_space<vmem>>, vector<1x256xf32>
    %c0_9 = arith.constant 0 : index
    %c0_10 = arith.constant 0 : index
    %c0_11 = arith.constant 0 : index
    %8 = vector.load %arg1[%c0_9, %c0_10, %c0_11] : memref<2x2x32xf32, #tpu.memory_space<vmem>>, vector<1x2x32xf32>
    %9 = vector.shape_cast %8 : vector<1x2x32xf32> to vector<2x32xf32>
    %c1 = arith.constant 1 : index
    %c0_12 = arith.constant 0 : index
    %c0_13 = arith.constant 0 : index
    %10 = vector.load %arg1[%c1, %c0_12, %c0_13] : memref<2x2x32xf32, #tpu.memory_space<vmem>>, vector<1x2x32xf32>
    %11 = vector.shape_cast %10 : vector<1x2x32xf32> to vector<2x32xf32>
    %12 = tpu.concatenate %9, %11 in 1 : vector<2x32xf32>, vector<2x32xf32> -> vector<2x64xf32>
    %c0_14 = arith.constant 0 : index
    %c0_15 = arith.constant 0 : index
    %c0_16 = arith.constant 0 : index
    %13 = vector.load %arg2[%c0_14, %c0_15, %c0_16] : memref<2x2x32xf32, #tpu.memory_space<vmem>>, vector<1x2x32xf32>
    %14 = vector.shape_cast %13 : vector<1x2x32xf32> to vector<2x32xf32>
    %c1_17 = arith.constant 1 : index
    %c0_18 = arith.constant 0 : index
    %c0_19 = arith.constant 0 : index
    %15 = vector.load %arg2[%c1_17, %c0_18, %c0_19] : memref<2x2x32xf32, #tpu.memory_space<vmem>>, vector<1x2x32xf32>
    %16 = vector.shape_cast %15 : vector<1x2x32xf32> to vector<2x32xf32>
    %17 = tpu.concatenate %14, %16 in 1 : vector<2x32xf32>, vector<2x32xf32> -> vector<2x64xf32>
    %cst_20 = arith.constant dense<0.000000e+00> : vector<2x256xf32>
    %18 = tpu.matmul %12, %6, %cst_20 {dimension_numbers = #tpu.dot_dimension_numbers<[1], [0], [0], [1], [0, 0, 1, 1], [], []>} : vector<2x64xf32>, vector<64x256xf32>, vector<2x256xf32> -> vector<2x256xf32>
    %19 = vector.extract_strided_slice %5 {offsets = [0, 0], sizes = [2, 256], strides = [1, 1]} : vector<16x256xf32> to vector<2x256xf32>
    %20 = arith.addf %18, %19 : vector<2x256xf32>
    %21 = arith.negf %20 : vector<2x256xf32>
    %22 = math.exp %21 : vector<2x256xf32>
    %cst_21 = arith.constant 1.000000e+00 : f32
    %23 = vector.broadcast %cst_21 : f32 to vector<2x256xf32>
    %24 = arith.addf %23, %22 : vector<2x256xf32>
    %25 = arith.divf %23, %24 : vector<2x256xf32>
    %26 = math.tanh %20 : vector<2x256xf32>
    %27 = vector.extract_strided_slice %25 {offsets = [0, 0], sizes = [2, 64], strides = [1, 1]} : vector<2x256xf32> to vector<2x64xf32>
    %28 = vector.extract_strided_slice %25 {offsets = [0, 64], sizes = [2, 64], strides = [1, 1]} : vector<2x256xf32> to vector<2x64xf32>
    %29 = vector.extract_strided_slice %26 {offsets = [0, 128], sizes = [2, 64], strides = [1, 1]} : vector<2x256xf32> to vector<2x64xf32>
    %30 = vector.extract_strided_slice %25 {offsets = [0, 192], sizes = [2, 64], strides = [1, 1]} : vector<2x256xf32> to vector<2x64xf32>
    %31 = arith.mulf %28, %17 : vector<2x64xf32>
    %32 = arith.mulf %27, %29 : vector<2x64xf32>
    %33 = arith.addf %31, %32 : vector<2x64xf32>
    %34 = math.tanh %33 : vector<2x64xf32>
    %35 = arith.mulf %30, %34 : vector<2x64xf32>
    %36 = vector.extract_strided_slice %35 {offsets = [0, 0], sizes = [2, 32], strides = [1, 1]} : vector<2x64xf32> to vector<2x32xf32>
    %37 = vector.extract_strided_slice %12 {offsets = [0, 32], sizes = [2, 32], strides = [1, 1]} : vector<2x64xf32> to vector<2x32xf32>
    %38 = tpu.concatenate %36, %37 in 1 : vector<2x32xf32>, vector<2x32xf32> -> vector<2x64xf32>
    %39 = vector.extract_strided_slice %33 {offsets = [0, 0], sizes = [2, 32], strides = [1, 1]} : vector<2x64xf32> to vector<2x32xf32>
    %40 = vector.extract_strided_slice %17 {offsets = [0, 32], sizes = [2, 32], strides = [1, 1]} : vector<2x64xf32> to vector<2x32xf32>
    %41 = tpu.concatenate %39, %40 in 1 : vector<2x32xf32>, vector<2x32xf32> -> vector<2x64xf32>
    %cst_22 = arith.constant dense<0.000000e+00> : vector<2x256xf32>
    %42 = tpu.matmul %38, %6, %cst_22 {dimension_numbers = #tpu.dot_dimension_numbers<[1], [0], [0], [1], [0, 0, 1, 1], [], []>} : vector<2x64xf32>, vector<64x256xf32>, vector<2x256xf32> -> vector<2x256xf32>
    %43 = vector.extract_strided_slice %5 {offsets = [2, 0], sizes = [2, 256], strides = [1, 1]} : vector<16x256xf32> to vector<2x256xf32>
    %44 = arith.addf %42, %43 : vector<2x256xf32>
    %45 = arith.negf %44 : vector<2x256xf32>
    %46 = math.exp %45 : vector<2x256xf32>
    %cst_23 = arith.constant 1.000000e+00 : f32
    %47 = vector.broadcast %cst_23 : f32 to vector<2x256xf32>
    %48 = arith.addf %47, %46 : vector<2x256xf32>
    %49 = arith.divf %47, %48 : vector<2x256xf32>
    %50 = math.tanh %44 : vector<2x256xf32>
    %51 = vector.extract_strided_slice %49 {offsets = [0, 0], sizes = [2, 64], strides = [1, 1]} : vector<2x256xf32> to vector<2x64xf32>
    %52 = vector.extract_strided_slice %49 {offsets = [0, 64], sizes = [2, 64], strides = [1, 1]} : vector<2x256xf32> to vector<2x64xf32>
    %53 = vector.extract_strided_slice %50 {offsets = [0, 128], sizes = [2, 64], strides = [1, 1]} : vector<2x256xf32> to vector<2x64xf32>
    %54 = vector.extract_strided_slice %49 {offsets = [0, 192], sizes = [2, 64], strides = [1, 1]} : vector<2x256xf32> to vector<2x64xf32>
    %55 = arith.mulf %52, %41 : vector<2x64xf32>
    %56 = arith.mulf %51, %53 : vector<2x64xf32>
    %57 = arith.addf %55, %56 : vector<2x64xf32>
    %58 = math.tanh %57 : vector<2x64xf32>
    %59 = arith.mulf %54, %58 : vector<2x64xf32>
    %cst_24 = arith.constant dense<0.000000e+00> : vector<2x256xf32>
    %60 = tpu.matmul %59, %6, %cst_24 {dimension_numbers = #tpu.dot_dimension_numbers<[1], [0], [0], [1], [0, 0, 1, 1], [], []>} : vector<2x64xf32>, vector<64x256xf32>, vector<2x256xf32> -> vector<2x256xf32>
    %61 = vector.extract_strided_slice %5 {offsets = [4, 0], sizes = [2, 256], strides = [1, 1]} : vector<16x256xf32> to vector<2x256xf32>
    %62 = arith.addf %60, %61 : vector<2x256xf32>
    %63 = arith.negf %62 : vector<2x256xf32>
    %64 = math.exp %63 : vector<2x256xf32>
    %cst_25 = arith.constant 1.000000e+00 : f32
    %65 = vector.broadcast %cst_25 : f32 to vector<2x256xf32>
    %66 = arith.addf %65, %64 : vector<2x256xf32>
    %67 = arith.divf %65, %66 : vector<2x256xf32>
    %68 = math.tanh %62 : vector<2x256xf32>
    %69 = vector.extract_strided_slice %67 {offsets = [0, 0], sizes = [2, 64], strides = [1, 1]} : vector<2x256xf32> to vector<2x64xf32>
    %70 = vector.extract_strided_slice %67 {offsets = [0, 64], sizes = [2, 64], strides = [1, 1]} : vector<2x256xf32> to vector<2x64xf32>
    %71 = vector.extract_strided_slice %68 {offsets = [0, 128], sizes = [2, 64], strides = [1, 1]} : vector<2x256xf32> to vector<2x64xf32>
    %72 = vector.extract_strided_slice %67 {offsets = [0, 192], sizes = [2, 64], strides = [1, 1]} : vector<2x256xf32> to vector<2x64xf32>
    %73 = arith.mulf %70, %57 : vector<2x64xf32>
    %74 = arith.mulf %69, %71 : vector<2x64xf32>
    %75 = arith.addf %73, %74 : vector<2x64xf32>
    %76 = math.tanh %75 : vector<2x64xf32>
    %77 = arith.mulf %72, %76 : vector<2x64xf32>
    %cst_26 = arith.constant dense<0.000000e+00> : vector<2x256xf32>
    %78 = tpu.matmul %77, %6, %cst_26 {dimension_numbers = #tpu.dot_dimension_numbers<[1], [0], [0], [1], [0, 0, 1, 1], [], []>} : vector<2x64xf32>, vector<64x256xf32>, vector<2x256xf32> -> vector<2x256xf32>
    %79 = vector.extract_strided_slice %5 {offsets = [6, 0], sizes = [2, 256], strides = [1, 1]} : vector<16x256xf32> to vector<2x256xf32>
    %80 = arith.addf %78, %79 : vector<2x256xf32>
    %81 = arith.negf %80 : vector<2x256xf32>
    %82 = math.exp %81 : vector<2x256xf32>
    %cst_27 = arith.constant 1.000000e+00 : f32
    %83 = vector.broadcast %cst_27 : f32 to vector<2x256xf32>
    %84 = arith.addf %83, %82 : vector<2x256xf32>
    %85 = arith.divf %83, %84 : vector<2x256xf32>
    %86 = math.tanh %80 : vector<2x256xf32>
    %87 = vector.extract_strided_slice %85 {offsets = [0, 0], sizes = [2, 64], strides = [1, 1]} : vector<2x256xf32> to vector<2x64xf32>
    %88 = vector.extract_strided_slice %85 {offsets = [0, 64], sizes = [2, 64], strides = [1, 1]} : vector<2x256xf32> to vector<2x64xf32>
    %89 = vector.extract_strided_slice %86 {offsets = [0, 128], sizes = [2, 64], strides = [1, 1]} : vector<2x256xf32> to vector<2x64xf32>
    %90 = vector.extract_strided_slice %85 {offsets = [0, 192], sizes = [2, 64], strides = [1, 1]} : vector<2x256xf32> to vector<2x64xf32>
    %91 = arith.mulf %88, %75 : vector<2x64xf32>
    %92 = arith.mulf %87, %89 : vector<2x64xf32>
    %93 = arith.addf %91, %92 : vector<2x64xf32>
    %94 = math.tanh %93 : vector<2x64xf32>
    %95 = arith.mulf %90, %94 : vector<2x64xf32>
    %cst_28 = arith.constant dense<0.000000e+00> : vector<2x256xf32>
    %96 = tpu.matmul %95, %6, %cst_28 {dimension_numbers = #tpu.dot_dimension_numbers<[1], [0], [0], [1], [0, 0, 1, 1], [], []>} : vector<2x64xf32>, vector<64x256xf32>, vector<2x256xf32> -> vector<2x256xf32>
    %97 = vector.extract_strided_slice %5 {offsets = [8, 0], sizes = [2, 256], strides = [1, 1]} : vector<16x256xf32> to vector<2x256xf32>
    %98 = arith.addf %96, %97 : vector<2x256xf32>
    %99 = arith.negf %98 : vector<2x256xf32>
    %100 = math.exp %99 : vector<2x256xf32>
    %cst_29 = arith.constant 1.000000e+00 : f32
    %101 = vector.broadcast %cst_29 : f32 to vector<2x256xf32>
    %102 = arith.addf %101, %100 : vector<2x256xf32>
    %103 = arith.divf %101, %102 : vector<2x256xf32>
    %104 = math.tanh %98 : vector<2x256xf32>
    %105 = vector.extract_strided_slice %103 {offsets = [0, 0], sizes = [2, 64], strides = [1, 1]} : vector<2x256xf32> to vector<2x64xf32>
    %106 = vector.extract_strided_slice %103 {offsets = [0, 64], sizes = [2, 64], strides = [1, 1]} : vector<2x256xf32> to vector<2x64xf32>
    %107 = vector.extract_strided_slice %104 {offsets = [0, 128], sizes = [2, 64], strides = [1, 1]} : vector<2x256xf32> to vector<2x64xf32>
    %108 = vector.extract_strided_slice %103 {offsets = [0, 192], sizes = [2, 64], strides = [1, 1]} : vector<2x256xf32> to vector<2x64xf32>
    %109 = arith.mulf %106, %93 : vector<2x64xf32>
    %110 = arith.mulf %105, %107 : vector<2x64xf32>
    %111 = arith.addf %109, %110 : vector<2x64xf32>
    %112 = math.tanh %111 : vector<2x64xf32>
    %113 = arith.mulf %108, %112 : vector<2x64xf32>
    %cst_30 = arith.constant dense<0.000000e+00> : vector<2x256xf32>
    %114 = tpu.matmul %113, %6, %cst_30 {dimension_numbers = #tpu.dot_dimension_numbers<[1], [0], [0], [1], [0, 0, 1, 1], [], []>} : vector<2x64xf32>, vector<64x256xf32>, vector<2x256xf32> -> vector<2x256xf32>
    %115 = vector.extract_strided_slice %5 {offsets = [10, 0], sizes = [2, 256], strides = [1, 1]} : vector<16x256xf32> to vector<2x256xf32>
    %116 = arith.addf %114, %115 : vector<2x256xf32>
    %117 = arith.negf %116 : vector<2x256xf32>
    %118 = math.exp %117 : vector<2x256xf32>
    %cst_31 = arith.constant 1.000000e+00 : f32
    %119 = vector.broadcast %cst_31 : f32 to vector<2x256xf32>
    %120 = arith.addf %119, %118 : vector<2x256xf32>
    %121 = arith.divf %119, %120 : vector<2x256xf32>
    %122 = math.tanh %116 : vector<2x256xf32>
    %123 = vector.extract_strided_slice %121 {offsets = [0, 0], sizes = [2, 64], strides = [1, 1]} : vector<2x256xf32> to vector<2x64xf32>
    %124 = vector.extract_strided_slice %121 {offsets = [0, 64], sizes = [2, 64], strides = [1, 1]} : vector<2x256xf32> to vector<2x64xf32>
    %125 = vector.extract_strided_slice %122 {offsets = [0, 128], sizes = [2, 64], strides = [1, 1]} : vector<2x256xf32> to vector<2x64xf32>
    %126 = vector.extract_strided_slice %121 {offsets = [0, 192], sizes = [2, 64], strides = [1, 1]} : vector<2x256xf32> to vector<2x64xf32>
    %127 = arith.mulf %124, %111 : vector<2x64xf32>
    %128 = arith.mulf %123, %125 : vector<2x64xf32>
    %129 = arith.addf %127, %128 : vector<2x64xf32>
    %130 = math.tanh %129 : vector<2x64xf32>
    %131 = arith.mulf %126, %130 : vector<2x64xf32>
    %cst_32 = arith.constant dense<0.000000e+00> : vector<2x256xf32>
    %132 = tpu.matmul %131, %6, %cst_32 {dimension_numbers = #tpu.dot_dimension_numbers<[1], [0], [0], [1], [0, 0, 1, 1], [], []>} : vector<2x64xf32>, vector<64x256xf32>, vector<2x256xf32> -> vector<2x256xf32>
    %133 = vector.extract_strided_slice %5 {offsets = [12, 0], sizes = [2, 256], strides = [1, 1]} : vector<16x256xf32> to vector<2x256xf32>
    %134 = arith.addf %132, %133 : vector<2x256xf32>
    %135 = arith.negf %134 : vector<2x256xf32>
    %136 = math.exp %135 : vector<2x256xf32>
    %cst_33 = arith.constant 1.000000e+00 : f32
    %137 = vector.broadcast %cst_33 : f32 to vector<2x256xf32>
    %138 = arith.addf %137, %136 : vector<2x256xf32>
    %139 = arith.divf %137, %138 : vector<2x256xf32>
    %140 = math.tanh %134 : vector<2x256xf32>
    %141 = vector.extract_strided_slice %139 {offsets = [0, 0], sizes = [2, 64], strides = [1, 1]} : vector<2x256xf32> to vector<2x64xf32>
    %142 = vector.extract_strided_slice %139 {offsets = [0, 64], sizes = [2, 64], strides = [1, 1]} : vector<2x256xf32> to vector<2x64xf32>
    %143 = vector.extract_strided_slice %140 {offsets = [0, 128], sizes = [2, 64], strides = [1, 1]} : vector<2x256xf32> to vector<2x64xf32>
    %144 = vector.extract_strided_slice %139 {offsets = [0, 192], sizes = [2, 64], strides = [1, 1]} : vector<2x256xf32> to vector<2x64xf32>
    %145 = arith.mulf %142, %129 : vector<2x64xf32>
    %146 = arith.mulf %141, %143 : vector<2x64xf32>
    %147 = arith.addf %145, %146 : vector<2x64xf32>
    %148 = math.tanh %147 : vector<2x64xf32>
    %149 = arith.mulf %144, %148 : vector<2x64xf32>
    %cst_34 = arith.constant dense<0.000000e+00> : vector<2x256xf32>
    %150 = tpu.matmul %149, %6, %cst_34 {dimension_numbers = #tpu.dot_dimension_numbers<[1], [0], [0], [1], [0, 0, 1, 1], [], []>} : vector<2x64xf32>, vector<64x256xf32>, vector<2x256xf32> -> vector<2x256xf32>
    %151 = vector.extract_strided_slice %5 {offsets = [14, 0], sizes = [2, 256], strides = [1, 1]} : vector<16x256xf32> to vector<2x256xf32>
    %152 = arith.addf %150, %151 : vector<2x256xf32>
    %153 = arith.negf %152 : vector<2x256xf32>
    %154 = math.exp %153 : vector<2x256xf32>
    %cst_35 = arith.constant 1.000000e+00 : f32
    %155 = vector.broadcast %cst_35 : f32 to vector<2x256xf32>
    %156 = arith.addf %155, %154 : vector<2x256xf32>
    %157 = arith.divf %155, %156 : vector<2x256xf32>
    %158 = math.tanh %152 : vector<2x256xf32>
    %159 = vector.extract_strided_slice %157 {offsets = [0, 0], sizes = [2, 64], strides = [1, 1]} : vector<2x256xf32> to vector<2x64xf32>
    %160 = vector.extract_strided_slice %157 {offsets = [0, 64], sizes = [2, 64], strides = [1, 1]} : vector<2x256xf32> to vector<2x64xf32>
    %161 = vector.extract_strided_slice %158 {offsets = [0, 128], sizes = [2, 64], strides = [1, 1]} : vector<2x256xf32> to vector<2x64xf32>
    %162 = vector.extract_strided_slice %157 {offsets = [0, 192], sizes = [2, 64], strides = [1, 1]} : vector<2x256xf32> to vector<2x64xf32>
    %163 = arith.mulf %160, %147 : vector<2x64xf32>
    %164 = arith.mulf %159, %161 : vector<2x64xf32>
    %165 = arith.addf %163, %164 : vector<2x64xf32>
    %166 = math.tanh %165 : vector<2x64xf32>
    %167 = arith.mulf %162, %166 : vector<2x64xf32>
    %cst_36 = arith.constant dense<0.000000e+00> : vector<2x256xf32>
    %168 = tpu.matmul %167, %6, %cst_36 {dimension_numbers = #tpu.dot_dimension_numbers<[1], [0], [0], [1], [0, 0, 1, 1], [], []>} : vector<2x64xf32>, vector<64x256xf32>, vector<2x256xf32> -> vector<2x256xf32>
    %169 = vector.broadcast %7 : vector<1x256xf32> to vector<2x256xf32>
    %170 = arith.addf %168, %169 : vector<2x256xf32>
    %171 = arith.negf %170 : vector<2x256xf32>
    %172 = math.exp %171 : vector<2x256xf32>
    %cst_37 = arith.constant 1.000000e+00 : f32
    %173 = vector.broadcast %cst_37 : f32 to vector<2x256xf32>
    %174 = arith.addf %173, %172 : vector<2x256xf32>
    %175 = arith.divf %173, %174 : vector<2x256xf32>
    %176 = math.tanh %170 : vector<2x256xf32>
    %177 = vector.extract_strided_slice %175 {offsets = [0, 0], sizes = [2, 64], strides = [1, 1]} : vector<2x256xf32> to vector<2x64xf32>
    %178 = vector.extract_strided_slice %175 {offsets = [0, 64], sizes = [2, 64], strides = [1, 1]} : vector<2x256xf32> to vector<2x64xf32>
    %179 = vector.extract_strided_slice %176 {offsets = [0, 128], sizes = [2, 64], strides = [1, 1]} : vector<2x256xf32> to vector<2x64xf32>
    %180 = vector.extract_strided_slice %175 {offsets = [0, 192], sizes = [2, 64], strides = [1, 1]} : vector<2x256xf32> to vector<2x64xf32>
    %181 = arith.mulf %178, %165 : vector<2x64xf32>
    %182 = arith.mulf %177, %179 : vector<2x64xf32>
    %183 = arith.addf %181, %182 : vector<2x64xf32>
    %184 = math.tanh %183 : vector<2x64xf32>
    %185 = arith.mulf %180, %184 : vector<2x64xf32>
    %186 = vector.extract_strided_slice %167 {offsets = [0, 0], sizes = [2, 32], strides = [1, 1]} : vector<2x64xf32> to vector<2x32xf32>
    %187 = vector.extract_strided_slice %185 {offsets = [0, 32], sizes = [2, 32], strides = [1, 1]} : vector<2x64xf32> to vector<2x32xf32>
    %188 = tpu.concatenate %186, %187 in 1 : vector<2x32xf32>, vector<2x32xf32> -> vector<2x64xf32>
    %189 = vector.extract_strided_slice %165 {offsets = [0, 0], sizes = [2, 32], strides = [1, 1]} : vector<2x64xf32> to vector<2x32xf32>
    %190 = vector.extract_strided_slice %183 {offsets = [0, 32], sizes = [2, 32], strides = [1, 1]} : vector<2x64xf32> to vector<2x32xf32>
    %191 = tpu.concatenate %189, %190 in 1 : vector<2x32xf32>, vector<2x32xf32> -> vector<2x64xf32>
    %192 = vector.extract_strided_slice %188 {offsets = [0, 32], sizes = [2, 32], strides = [1, 1]} : vector<2x64xf32> to vector<2x32xf32>
    %c0_38 = arith.constant 0 : index
    %c0_39 = arith.constant 0 : index
    %193 = vector.load %arg6[%c0_38, %c0_39] : memref<32x64xf32, #tpu.memory_space<vmem>>, vector<32x64xf32>
    %cst_40 = arith.constant dense<0.000000e+00> : vector<2x64xf32>
    %194 = tpu.matmul %192, %193, %cst_40 {dimension_numbers = #tpu.dot_dimension_numbers<[1], [0], [0], [1], [0, 0, 1, 1], [], []>} : vector<2x32xf32>, vector<32x64xf32>, vector<2x64xf32> -> vector<2x64xf32>
    %c0_41 = arith.constant 0 : index
    %c0_42 = arith.constant 0 : index
    %195 = vector.load %arg7[%c0_41, %c0_42] : memref<1x64xf32, #tpu.memory_space<vmem>>, vector<1x64xf32>
    %196 = vector.broadcast %195 : vector<1x64xf32> to vector<2x64xf32>
    %197 = arith.addf %194, %196 : vector<2x64xf32>
    %c0_43 = arith.constant 0 : index
    %c0_44 = arith.constant 0 : index
    %198 = vector.load %arg8[%c0_43, %c0_44] : memref<64x16xf32, #tpu.memory_space<vmem>>, vector<64x16xf32>
    %cst_45 = arith.constant dense<0.000000e+00> : vector<2x16xf32>
    %199 = tpu.matmul %197, %198, %cst_45 {dimension_numbers = #tpu.dot_dimension_numbers<[1], [0], [0], [1], [0, 0, 1, 1], [], []>} : vector<2x64xf32>, vector<64x16xf32>, vector<2x16xf32> -> vector<2x16xf32>
    %c0_46 = arith.constant 0 : index
    %c0_47 = arith.constant 0 : index
    %200 = vector.load %arg9[%c0_46, %c0_47] : memref<1x16xf32, #tpu.memory_space<vmem>>, vector<1x16xf32>
    %201 = vector.broadcast %200 : vector<1x16xf32> to vector<2x16xf32>
    %202 = arith.addf %199, %201 : vector<2x16xf32>
    %c0_48 = arith.constant 0 : index
    %c0_49 = arith.constant 0 : index
    %203 = vector.load %arg10[%c0_48, %c0_49] : memref<16x1xf32, #tpu.memory_space<vmem>>, vector<16x1xf32>
    %cst_50 = arith.constant dense<0.000000e+00> : vector<2x1xf32>
    %204 = tpu.matmul %202, %203, %cst_50 {dimension_numbers = #tpu.dot_dimension_numbers<[1], [0], [0], [1], [0, 0, 1, 1], [], []>} : vector<2x16xf32>, vector<16x1xf32>, vector<2x1xf32> -> vector<2x1xf32>
    %c0_51 = arith.constant 0 : index
    %c0_52 = arith.constant 0 : index
    %205 = vector.load %arg11[%c0_51, %c0_52] : memref<1x1xf32, #tpu.memory_space<vmem>>, vector<1x1xf32>
    %206 = vector.broadcast %205 : vector<1x1xf32> to vector<2x1xf32>
    %207 = arith.addf %204, %206 : vector<2x1xf32>
    %208 = arith.negf %207 : vector<2x1xf32>
    %209 = math.exp %208 : vector<2x1xf32>
    %cst_53 = arith.constant 1.000000e+00 : f32
    %210 = vector.broadcast %cst_53 : f32 to vector<2x1xf32>
    %211 = arith.addf %210, %209 : vector<2x1xf32>
    %212 = arith.divf %210, %211 : vector<2x1xf32>
    %c0_54 = arith.constant 0 : index
    %c0_55 = arith.constant 0 : index
    %213 = vector.load %arg12[%c0_54, %c0_55] : memref<2x1xf32, #tpu.memory_space<vmem>>, vector<2x1xf32>
    tpu.vector_store %arg12[%c0_54, %c0_55], %212 {strides = array<i32>} : memref<2x1xf32, #tpu.memory_space<vmem>>, vector<2x1xf32>,
    %214 = vector.extract_strided_slice %188 {offsets = [0, 0], sizes = [2, 32], strides = [1, 1]} : vector<2x64xf32> to vector<2x32xf32>
    %c0_56 = arith.constant 0 : index
    %c0_57 = arith.constant 0 : index
    %c0_58 = arith.constant 0 : index
    %215 = vector.load %arg13[%c0_56, %c0_57, %c0_58] : memref<2x2x32xf32, #tpu.memory_space<vmem>>, vector<1x2x32xf32>
    %216 = vector.shape_cast %215 : vector<1x2x32xf32> to vector<2x32xf32>
    %217 = vector.shape_cast %214 : vector<2x32xf32> to vector<1x2x32xf32>
    tpu.vector_store %arg13[%c0_56, %c0_57, %c0_58], %217 {strides = array<i32>} : memref<2x2x32xf32, #tpu.memory_space<vmem>>, vector<1x2x32xf32>,
    %218 = vector.extract_strided_slice %188 {offsets = [0, 32], sizes = [2, 32], strides = [1, 1]} : vector<2x64xf32> to vector<2x32xf32>
    %c1_59 = arith.constant 1 : index
    %c0_60 = arith.constant 0 : index
    %c0_61 = arith.constant 0 : index
    %219 = vector.load %arg13[%c1_59, %c0_60, %c0_61] : memref<2x2x32xf32, #tpu.memory_space<vmem>>, vector<1x2x32xf32>
    %220 = vector.shape_cast %219 : vector<1x2x32xf32> to vector<2x32xf32>
    %221 = vector.shape_cast %218 : vector<2x32xf32> to vector<1x2x32xf32>
    tpu.vector_store %arg13[%c1_59, %c0_60, %c0_61], %221 {strides = array<i32>} : memref<2x2x32xf32, #tpu.memory_space<vmem>>, vector<1x2x32xf32>,
    %222 = vector.extract_strided_slice %191 {offsets = [0, 0], sizes = [2, 32], strides = [1, 1]} : vector<2x64xf32> to vector<2x32xf32>
    %c0_62 = arith.constant 0 : index
    %c0_63 = arith.constant 0 : index
    %c0_64 = arith.constant 0 : index
    %223 = vector.load %arg14[%c0_62, %c0_63, %c0_64] : memref<2x2x32xf32, #tpu.memory_space<vmem>>, vector<1x2x32xf32>
    %224 = vector.shape_cast %223 : vector<1x2x32xf32> to vector<2x32xf32>
    %225 = vector.shape_cast %222 : vector<2x32xf32> to vector<1x2x32xf32>
    tpu.vector_store %arg14[%c0_62, %c0_63, %c0_64], %225 {strides = array<i32>} : memref<2x2x32xf32, #tpu.memory_space<vmem>>, vector<1x2x32xf32>,
    %226 = vector.extract_strided_slice %191 {offsets = [0, 32], sizes = [2, 32], strides = [1, 1]} : vector<2x64xf32> to vector<2x32xf32>
    %c1_65 = arith.constant 1 : index
    %c0_66 = arith.constant 0 : index
    %c0_67 = arith.constant 0 : index
    %227 = vector.load %arg14[%c1_65, %c0_66, %c0_67] : memref<2x2x32xf32, #tpu.memory_space<vmem>>, vector<1x2x32xf32>
    %228 = vector.shape_cast %227 : vector<1x2x32xf32> to vector<2x32xf32>
    %229 = vector.shape_cast %226 : vector<2x32xf32> to vector<1x2x32xf32>
    tpu.vector_store %arg14[%c1_65, %c0_66, %c0_67], %229 {strides = array<i32>} : memref<2x2x32xf32, #tpu.memory_space<vmem>>, vector<1x2x32xf32>,
    return
  }
}

</mosaic_0001>

<llo_original>
// kernel: sentimental_lstm_forward.1
$region0: #{sentimental_lstm_forward.1}
  #allocation0 [shape = 'u32[]', space=smem, size = 0x4, offset = 0x4, fixed_abs, tag = 'smem constant byte address 0x4 - core index']
  #allocation1 [shape = 'u32[144,128]{1,0:T(1,128)}', space=vmem, size = 0x12000, scoped, tag = 'internal scratch']
  #allocation2 [shape = 'f32[1,1]{1,0:T(1,128)S(1)}', space=vmem, size = 0x200, scoped, tag = 'scoped memory for sentimental_lstm_forward.1']
  %s0 = inlined_call_operand.vmem [shape: f32[16,32], index: 0, kind: input, shape index: {}]
  %s1 = inlined_call_operand.vmem [shape: f32[2,2,32], index: 1, kind: input, shape index: {}]
  %s2 = inlined_call_operand.vmem [shape: f32[2,2,32], index: 2, kind: input, shape index: {}]
  %s3 = inlined_call_operand.vmem [shape: f32[32,256], index: 3, kind: input, shape index: {}]
  %s4 = inlined_call_operand.vmem [shape: f32[1,256], index: 4, kind: input, shape index: {}]
  %s5 = inlined_call_operand.vmem [shape: f32[64,256], index: 5, kind: input, shape index: {}]
  %s6 = inlined_call_operand.vmem [shape: f32[32,64], index: 6, kind: input, shape index: {}]
  %s7 = inlined_call_operand.vmem [shape: f32[1,64], index: 7, kind: input, shape index: {}]
  %s8 = inlined_call_operand.vmem [shape: f32[64,16], index: 8, kind: input, shape index: {}]
  %s9 = inlined_call_operand.vmem [shape: f32[1,16], index: 9, kind: input, shape index: {}]
  %s10 = inlined_call_operand.vmem [shape: f32[16,1], index: 10, kind: input, shape index: {}]
  %s11 = inlined_call_operand.<no memory space> [shape: f32[1,1], index: 11, kind: input, shape index: {}]
  %s12 = inlined_call_operand.vmem [shape: f32[2,1], index: 12, kind: output, shape index: {0}]
  %s13 = inlined_call_operand.hbm [shape: f32[2,2,32], index: 13, kind: output, shape index: {1}]
  %s14 = inlined_call_operand.hbm [shape: f32[2,2,32], index: 14, kind: output, shape index: {2}]
  %15 = xla_tuple %s12, %s13, %s14
  %s16 = sld [smem:[#allocation0]]
  $region74: #{sentimental_lstm_forward.1} parent=0
    _
  %s18 = ssub.s32 1, %s16
  %s19 = scalar_select 0, %s18, %s16
  %v20 = vstv %s11
  %21 = vst [vmem:[#allocation2] sm:$0x1] %v20
  $region1: #{sentimental_lstm_forward.1} parent=0
    #allocation3 [shape = 'u8[2048]{0}', space=vmem, size = 0x800, scoped, tag = 'output window, operand 1, single buffered']
    #allocation4 [shape = 's32[1]{0}', space=sflag, size = 0x4, scoped, tag = 'scoped memory for sentimental_lstm_forward.1']
    #allocation5 [shape = 'u8[2048]{0}', space=vmem, size = 0x800, scoped, tag = 'output window, operand 2, single buffered']
    #allocation6 [shape = 's32[1]{0}', space=sflag, size = 0x4, scoped, tag = 'scoped memory for sentimental_lstm_forward.1']
    %22 = vsyncpa [#allocation4], 0
    %23 = vsyncpa [#allocation6], 0
    // Predicated region
    $region2: #{sentimental_lstm_forward.1} parent=1 // pred_check
      _
    $region3: #{sentimental_lstm_forward.1} parent=1 // pred_check_branch
      %25 = sbr.rel (0) target = $region5
    $region4: #{sentimental_lstm_forward.1} parent=1 // pred_region
      _
    $region5: #{sentimental_lstm_forward.1} parent=1 // pred_fallthru
      _
    // Predicated region
    $region6: #{sentimental_lstm_forward.1} parent=1 // pred_check
      _
    $region7: #{sentimental_lstm_forward.1} parent=1 // pred_check_branch
      %27 = sbr.rel (0) target = $region9
    $region8: #{sentimental_lstm_forward.1} parent=1 // pred_region
      _
    $region9: #{sentimental_lstm_forward.1} parent=1 // pred_fallthru
      _
    // Predicated region
    $region10: #{sentimental_lstm_forward.1} parent=1 // pred_check
      _
    $region11: #{sentimental_lstm_forward.1} parent=1 // pred_check_branch
      %29 = sbr.rel (0) target = $region13
    $region12: #{sentimental_lstm_forward.1} parent=1 // pred_region
      _
    $region13: #{sentimental_lstm_forward.1} parent=1 // pred_fallthru
      _
    // Predicated region
    $region14: #{sentimental_lstm_forward.1} parent=1 // pred_check
      _
    $region15: #{sentimental_lstm_forward.1} parent=1 // pred_check_branch
      %31 = sbr.rel (0) target = $region17
    $region16: #{sentimental_lstm_forward.1} parent=1 // pred_region
      _
    $region17: #{sentimental_lstm_forward.1} parent=1 // pred_fallthru
      _
    // Predicated region
    $region18: #{sentimental_lstm_forward.1} parent=1 // pred_check
      _
    $region19: #{sentimental_lstm_forward.1} parent=1 // pred_check_branch
      %33 = sbr.rel (0) target = $region21
    $region20: #{sentimental_lstm_forward.1} parent=1 // pred_region
      _
    $region21: #{sentimental_lstm_forward.1} parent=1 // pred_fallthru
      _
    // Predicated region
    $region22: #{sentimental_lstm_forward.1} parent=1 // pred_check
      _
    $region23: #{sentimental_lstm_forward.1} parent=1 // pred_check_branch
      %35 = sbr.rel (0) target = $region25
    $region24: #{sentimental_lstm_forward.1} parent=1 // pred_region
      _
    $region25: #{sentimental_lstm_forward.1} parent=1 // pred_fallthru
      _
    // Predicated region
    $region26: #{sentimental_lstm_forward.1} parent=1 // pred_check
      _
    $region27: #{sentimental_lstm_forward.1} parent=1 // pred_check_branch
      %37 = sbr.rel (0) target = $region29
    $region28: #{sentimental_lstm_forward.1} parent=1 // pred_region
      _
    $region29: #{sentimental_lstm_forward.1} parent=1 // pred_fallthru
      _
    // Predicated region
    $region30: #{sentimental_lstm_forward.1} parent=1 // pred_check
      _
    $region31: #{sentimental_lstm_forward.1} parent=1 // pred_check_branch
      %39 = sbr.rel (0) target = $region33
    $region32: #{sentimental_lstm_forward.1} parent=1 // pred_region
      _
    $region33: #{sentimental_lstm_forward.1} parent=1 // pred_fallthru
      _
    // Predicated region
    $region34: #{sentimental_lstm_forward.1} parent=1 // pred_check
      _
    $region35: #{sentimental_lstm_forward.1} parent=1 // pred_check_branch
      %41 = sbr.rel (0) target = $region37
    $region36: #{sentimental_lstm_forward.1} parent=1 // pred_region
      _
    $region37: #{sentimental_lstm_forward.1} parent=1 // pred_fallthru
      _
    // Predicated region
    $region38: #{sentimental_lstm_forward.1} parent=1 // pred_check
      _
    $region39: #{sentimental_lstm_forward.1} parent=1 // pred_check_branch
      %43 = sbr.rel (0) target = $region41
    $region40: #{sentimental_lstm_forward.1} parent=1 // pred_region
      _
    $region41: #{sentimental_lstm_forward.1} parent=1 // pred_fallthru
      _
    // Predicated region
    $region42: #{sentimental_lstm_forward.1} parent=1 // pred_check
      _
    $region43: #{sentimental_lstm_forward.1} parent=1 // pred_check_branch
      %45 = sbr.rel (0) target = $region45
    $region44: #{sentimental_lstm_forward.1} parent=1 // pred_region
      _
    $region45: #{sentimental_lstm_forward.1} parent=1 // pred_fallthru
      _
    // Predicated region
    $region46: #{sentimental_lstm_forward.1} parent=1 // pred_check
      _
    $region47: #{sentimental_lstm_forward.1} parent=1 // pred_check_branch
      %47 = sbr.rel (0) target = $region49
    $region48: #{sentimental_lstm_forward.1} parent=1 // pred_region
      _
    $region49: #{sentimental_lstm_forward.1} parent=1 // pred_fallthru
      _
    %v48 = vld [vmem:[%s0] sm:$0xff]
    %v49 = vld [vmem:[%s0 + $0x8] sm:$0xff]
    %v50 = vld [vmem:[%s3] sm:$0xff]
    %v51 = vld [vmem:[%s3 + $0x8] sm:$0xff]
    %v52 = vld [vmem:[%s3 + $0x10] sm:$0xff]
    %v53 = vld [vmem:[%s3 + $0x18] sm:$0xff]
    %v54 = vld [vmem:[%s3 + $0x20] sm:$0xff]
    %v55 = vld [vmem:[%s3 + $0x28] sm:$0xff]
    %v56 = vld [vmem:[%s3 + $0x30] sm:$0xff]
    %v57 = vld [vmem:[%s3 + $0x38] sm:$0xff]
    %v58 = vld [vmem:[%s4] sm:$0x3]
    %v60 = vlaneseq
    %v61 = vshrl.u32 %v60, 7
    %v62 = vsub.s32 0, %v61
    %v63 = vrot.slane %v58, %v62
    %v64 = vlaneseq
    %v65 = vshrl.u32 %v64, 7
    %v66 = vsub.s32 1, %v65
    %v67 = vrot.slane %v58, %v66
    %vm70 = vcmask 261120
    %v72 = vsel %vm70, %v48, 0
    %v75 = vsel %vm70, %v49, 0
    %77 = vmatprep.subr.mxu0 %v51
    %78 = vmatpush1.msra.mxu0 %v50
    %79 = vmatprep.subr.mxu0 %v53
    %80 = vmatpush1.msra.mxu0 %v52
    %81 = vmatprep.subr.mxu0 %v55
    %82 = vmatpush1.msra.mxu0 %v54
    %83 = vmatprep.subr.mxu0 %v57
    %84 = vmatpush1.msra.mxu0 %v56
    %85 = vmatprep.subr.mxu0 0.0
    %86 = vmatpush1.msra.mxu0 0.0
    %87 = vmatprep.subr.mxu0 0.0
    %88 = vmatpush1.msra.mxu0 0.0
    %89 = vmatprep.subr.mxu0 0.0
    %90 = vmatpush1.msra.mxu0 0.0
    %91 = vmatprep.subr.mxu0 0.0
    %92 = vmatpush1.msra.mxu0 0.0
    %93 = vmatprep.subr.mxu0 0.0
    %94 = vmatpush1.msra.mxu0 0.0
    %95 = vmatprep.subr.mxu0 0.0
    %96 = vmatpush1.msra.mxu0 0.0
    %97 = vmatprep.subr.mxu0 0.0
    %98 = vmatpush1.msra.mxu0 0.0
    %99 = vmatprep.subr.mxu0 0.0
    %100 = vmatpush1.msra.mxu0 0.0
    %101 = vmatprep.subr.mxu0 0.0
    %102 = vmatpush1.msra.mxu0 0.0
    %103 = vmatprep.subr.mxu0 0.0
    %104 = vmatpush1.msra.mxu0 0.0
    %105 = vmatprep.subr.mxu0 0.0
    %106 = vmatpush1.msra.mxu0 0.0
    %107 = vmatprep.subr.mxu0 0.0
    %108 = vmatpush1.msra.mxu0 0.0
    %109 = vmatprep.subr.mxu0 0.0
    %110 = vmatpush1.msra.mxu0 0.0
    %111 = vmatprep.subr.mxu0 0.0
    %112 = vmatpush1.msra.mxu0 0.0
    %113 = vmatprep.subr.mxu0 0.0
    %114 = vmatpush1.msra.mxu0 0.0
    %115 = vmatprep.subr.mxu0 0.0
    %116 = vmatpush1.msra.mxu0 0.0
    %117 = vmatprep.subr.mxu0 0.0
    %118 = vmatpush1.msra.mxu0 0.0
    %119 = vmatprep.subr.mxu0 0.0
    %120 = vmatpush1.msra.mxu0 0.0
    %121 = vmatprep.subr.mxu0 0.0
    %122 = vmatpush1.msra.mxu0 0.0
    %123 = vmatprep.subr.mxu0 0.0
    %124 = vmatpush1.msra.mxu0 0.0
    %125 = vmatprep.subr.mxu0 0.0
    %126 = vmatpush1.msra.mxu0 0.0
    %127 = vmatprep.subr.mxu0 0.0
    %128 = vmatpush1.msra.mxu0 0.0
    %129 = vmatprep.subr.mxu0 0.0
    %130 = vmatpush1.msra.mxu0 0.0
    %131 = vmatprep.subr.mxu0 0.0
    %132 = vmatpush1.msra.mxu0 0.0
    %133 = vmatprep.subr.mxu0 0.0
    %134 = vmatpush1.msra.mxu0 0.0
    %135 = vmatprep.subr.mxu0 0.0
    %136 = vmatpush1.msra.mxu0 0.0
    %137 = vmatprep.subr.mxu0 0.0
    %138 = vmatpush1.msra.mxu0 0.0
    %139 = vmatprep.subr.mxu0 0.0
    %140 = vmatpush1.msra.mxu0 0.0
    %141 = vmatprep.mubr.f32.mxu0 0.0
    %142 = vmatmul.mubr.f32.gmra.mrb[0].mxu0 %v72
    %v143 = vpop.f32.mrb[0].mxu0
    %v144 = vadd.f32 %v63, %v143
    %v145 = vpop.f32.mrb[0].mxu0
    %v146 = vadd.f32 %v67, %v145
    %147 = vmatprep.mubr.f32.mxu0 0.0
    %148 = vmatmul.mubr.f32.gmra.mrb[0].mxu0 %v75
    %v149 = vpop.f32.mrb[0].mxu0
    %v150 = vadd.f32 %v63, %v149
    %v151 = vpop.f32.mrb[0].mxu0
    %v152 = vadd.f32 %v67, %v151
    %153 = vdwg.mxu0
    %v154 = vld [vmem:[%s5] sm:$0xff]
    %v155 = vld [vmem:[%s5 + $0x8] sm:$0xff]
    %v156 = vld [vmem:[%s5 + $0x10] sm:$0xff]
    %v157 = vld [vmem:[%s5 + $0x18] sm:$0xff]
    %v158 = vld [vmem:[%s5 + $0x20] sm:$0xff]
    %v159 = vld [vmem:[%s5 + $0x28] sm:$0xff]
    %v160 = vld [vmem:[%s5 + $0x30] sm:$0xff]
    %v161 = vld [vmem:[%s5 + $0x38] sm:$0xff]
    %v162 = vld [vmem:[%s5 + $0x40] sm:$0xff]
    %v163 = vld [vmem:[%s5 + $0x48] sm:$0xff]
    %v164 = vld [vmem:[%s5 + $0x50] sm:$0xff]
    %v165 = vld [vmem:[%s5 + $0x58] sm:$0xff]
    %v166 = vld [vmem:[%s5 + $0x60] sm:$0xff]
    %v167 = vld [vmem:[%s5 + $0x68] sm:$0xff]
    %v168 = vld [vmem:[%s5 + $0x70] sm:$0xff]
    %v169 = vld [vmem:[%s5 + $0x78] sm:$0xff]
    %v170 = vld [vmem:[%s1] sm:$0x3]
    %s171 = scalar_lea.vmem %s1, 2
    %v172 = vld [vmem:[%s171] sm:$0x3]
    %174 = vrot.lane.b32.xlu0 %v172, 32
    %v175 = vpop.permute.xlu0 %174
    %v177 = vsel %vm70, %v170, %v175
    %v178 = vld [vmem:[%s2] sm:$0x3]
    %s179 = scalar_lea.vmem %s2, 2
    %v180 = vld [vmem:[%s179] sm:$0x3]
    %182 = vrot.lane.b32.xlu0 %v180, 32
    %v183 = vpop.permute.xlu0 %182
    %v185 = vsel %vm70, %v178, %v183
    %vm186 = vcmask 523264
    %v188 = vsel %vm186, %v177, 0
    %190 = vmatprep.subr.mxu0 %v155
    %191 = vmatpush1.msra.mxu0 %v154
    %192 = vmatprep.subr.mxu0 %v157
    %193 = vmatpush1.msra.mxu0 %v156
    %194 = vmatprep.subr.mxu0 %v159
    %195 = vmatpush1.msra.mxu0 %v158
    %196 = vmatprep.subr.mxu0 %v161
    %197 = vmatpush1.msra.mxu0 %v160
    %198 = vmatprep.subr.mxu0 %v163
    %199 = vmatpush1.msra.mxu0 %v162
    %200 = vmatprep.subr.mxu0 %v165
    %201 = vmatpush1.msra.mxu0 %v164
    %202 = vmatprep.subr.mxu0 %v167
    %203 = vmatpush1.msra.mxu0 %v166
    %204 = vmatprep.subr.mxu0 %v169
    %205 = vmatpush1.msra.mxu0 %v168
    %206 = vmatprep.subr.mxu0 0.0
    %207 = vmatpush1.msra.mxu0 0.0
    %208 = vmatprep.subr.mxu0 0.0
    %209 = vmatpush1.msra.mxu0 0.0
    %210 = vmatprep.subr.mxu0 0.0
    %211 = vmatpush1.msra.mxu0 0.0
    %212 = vmatprep.subr.mxu0 0.0
    %213 = vmatpush1.msra.mxu0 0.0
    %214 = vmatprep.subr.mxu0 0.0
    %215 = vmatpush1.msra.mxu0 0.0
    %216 = vmatprep.subr.mxu0 0.0
    %217 = vmatpush1.msra.mxu0 0.0
    %218 = vmatprep.subr.mxu0 0.0
    %219 = vmatpush1.msra.mxu0 0.0
    %220 = vmatprep.subr.mxu0 0.0
    %221 = vmatpush1.msra.mxu0 0.0
    %222 = vmatprep.subr.mxu0 0.0
    %223 = vmatpush1.msra.mxu0 0.0
    %224 = vmatprep.subr.mxu0 0.0
    %225 = vmatpush1.msra.mxu0 0.0
    %226 = vmatprep.subr.mxu0 0.0
    %227 = vmatpush1.msra.mxu0 0.0
    %228 = vmatprep.subr.mxu0 0.0
    %229 = vmatpush1.msra.mxu0 0.0
    %230 = vmatprep.subr.mxu0 0.0
    %231 = vmatpush1.msra.mxu0 0.0
    %232 = vmatprep.subr.mxu0 0.0
    %233 = vmatpush1.msra.mxu0 0.0
    %234 = vmatprep.subr.mxu0 0.0
    %235 = vmatpush1.msra.mxu0 0.0
    %236 = vmatprep.subr.mxu0 0.0
    %237 = vmatpush1.msra.mxu0 0.0
    %238 = vmatprep.subr.mxu0 0.0
    %239 = vmatpush1.msra.mxu0 0.0
    %240 = vmatprep.subr.mxu0 0.0
    %241 = vmatpush1.msra.mxu0 0.0
    %242 = vmatprep.subr.mxu0 0.0
    %243 = vmatpush1.msra.mxu0 0.0
    %244 = vmatprep.subr.mxu0 0.0
    %245 = vmatpush1.msra.mxu0 0.0
    %246 = vmatprep.subr.mxu0 0.0
    %247 = vmatpush1.msra.mxu0 0.0
    %248 = vmatprep.subr.mxu0 0.0
    %249 = vmatpush1.msra.mxu0 0.0
    %250 = vmatprep.subr.mxu0 0.0
    %251 = vmatpush1.msra.mxu0 0.0
    %252 = vmatprep.subr.mxu0 0.0
    %253 = vmatpush1.msra.mxu0 0.0
    %254 = vmatprep.mubr.f32.mxu0 0.0
    %255 = vmatmul.mubr.f32.gmra.mrb[0].mxu0 %v188
    %v256 = vpop.f32.mrb[0].mxu0
    %v257 = vadd.f32 %v144, %v256
    %v258 = vpop.f32.mrb[0].mxu0
    %v259 = vadd.f32 %v146, %v258
    %260 = vdwg.mxu0
    %v261 = vxor.u32 %v257, 2147483648
    %v262 = vxor.u32 %v259, 2147483648
    %v263 = vmul.f32 %v261, 1.442695
    %v264 = vpow.pop %v263
    %v265 = vmul.f32 %v262, 1.442695
    %v266 = vpow.pop %v265
    %v267 = vadd.f32 %v264, 1.0
    %v268 = vadd.f32 %v266, 1.0
    %v269 = vrcp.pop %v267
    %v270 = vmul.f32 1.0, %v269
    %v271 = vrcp.pop %v268
    %v272 = vmul.f32 1.0, %v271
    %v273 = vtanh.pop %v259
    %275 = vrot.lane.b32.xlu0 %v185, 64
    %v276 = vpop.permute.xlu0 %275
    %v278 = vmul.f32 %v270, %v276
    %v279 = vmul.f32 %v270, %v273
    %281 = vrot.lane.b32.xlu0 %v279, 64
    %v282 = vpop.permute.xlu0 %281
    %v284 = vadd.f32 %v278, %v282
    %v285 = vtanh.pop %v284
    %v286 = vmul.f32 %v272, %v285
    %288 = vrot.lane.b32.xlu0 %v286, 64
    %v289 = vpop.permute.xlu0 %288
    %v291 = vsel %vm70, %v289, %v177
    %293 = vrot.lane.b32.xlu0 %v284, 64
    %v294 = vpop.permute.xlu0 %293
    %v296 = vsel %vm70, %v294, %v185
    %v299 = vrot.slane %v144, 2
    %v300 = vrot.slane %v146, 2
    %v304 = vsel %vm186, %v291, 0
    %306 = vmatprep.subr.mxu0 %v155
    %307 = vmatpush1.msra.mxu0 %v154
    %308 = vmatprep.subr.mxu0 %v157
    %309 = vmatpush1.msra.mxu0 %v156
    %310 = vmatprep.subr.mxu0 %v159
    %311 = vmatpush1.msra.mxu0 %v158
    %312 = vmatprep.subr.mxu0 %v161
    %313 = vmatpush1.msra.mxu0 %v160
    %314 = vmatprep.subr.mxu0 %v163
    %315 = vmatpush1.msra.mxu0 %v162
    %316 = vmatprep.subr.mxu0 %v165
    %317 = vmatpush1.msra.mxu0 %v164
    %318 = vmatprep.subr.mxu0 %v167
    %319 = vmatpush1.msra.mxu0 %v166
    %320 = vmatprep.subr.mxu0 %v169
    %321 = vmatpush1.msra.mxu0 %v168
    %322 = vmatprep.subr.mxu0 0.0
    %323 = vmatpush1.msra.mxu0 0.0
    %324 = vmatprep.subr.mxu0 0.0
    %325 = vmatpush1.msra.mxu0 0.0
    %326 = vmatprep.subr.mxu0 0.0
    %327 = vmatpush1.msra.mxu0 0.0
    %328 = vmatprep.subr.mxu0 0.0
    %329 = vmatpush1.msra.mxu0 0.0
    %330 = vmatprep.subr.mxu0 0.0
    %331 = vmatpush1.msra.mxu0 0.0
    %332 = vmatprep.subr.mxu0 0.0
    %333 = vmatpush1.msra.mxu0 0.0
    %334 = vmatprep.subr.mxu0 0.0
    %335 = vmatpush1.msra.mxu0 0.0
    %336 = vmatprep.subr.mxu0 0.0
    %337 = vmatpush1.msra.mxu0 0.0
    %338 = vmatprep.subr.mxu0 0.0
    %339 = vmatpush1.msra.mxu0 0.0
    %340 = vmatprep.subr.mxu0 0.0
    %341 = vmatpush1.msra.mxu0 0.0
    %342 = vmatprep.subr.mxu0 0.0
    %343 = vmatpush1.msra.mxu0 0.0
    %344 = vmatprep.subr.mxu0 0.0
    %345 = vmatpush1.msra.mxu0 0.0
    %346 = vmatprep.subr.mxu0 0.0
    %347 = vmatpush1.msra.mxu0 0.0
    %348 = vmatprep.subr.mxu0 0.0
    %349 = vmatpush1.msra.mxu0 0.0
    %350 = vmatprep.subr.mxu0 0.0
    %351 = vmatpush1.msra.mxu0 0.0
    %352 = vmatprep.subr.mxu0 0.0
    %353 = vmatpush1.msra.mxu0 0.0
    %354 = vmatprep.subr.mxu0 0.0
    %355 = vmatpush1.msra.mxu0 0.0
    %356 = vmatprep.subr.mxu0 0.0
    %357 = vmatpush1.msra.mxu0 0.0
    %358 = vmatprep.subr.mxu0 0.0
    %359 = vmatpush1.msra.mxu0 0.0
    %360 = vmatprep.subr.mxu0 0.0
    %361 = vmatpush1.msra.mxu0 0.0
    %362 = vmatprep.subr.mxu0 0.0
    %363 = vmatpush1.msra.mxu0 0.0
    %364 = vmatprep.subr.mxu0 0.0
    %365 = vmatpush1.msra.mxu0 0.0
    %366 = vmatprep.subr.mxu0 0.0
    %367 = vmatpush1.msra.mxu0 0.0
    %368 = vmatprep.subr.mxu0 0.0
    %369 = vmatpush1.msra.mxu0 0.0
    %370 = vmatprep.mubr.f32.mxu0 0.0
    %371 = vmatmul.mubr.f32.gmra.mrb[0].mxu0 %v304
    %v372 = vpop.f32.mrb[0].mxu0
    %v373 = vadd.f32 %v299, %v372
    %v374 = vpop.f32.mrb[0].mxu0
    %v375 = vadd.f32 %v300, %v374
    %376 = vdwg.mxu0
    %v377 = vxor.u32 %v373, 2147483648
    %v378 = vxor.u32 %v375, 2147483648
    %v379 = vmul.f32 %v377, 1.442695
    %v380 = vpow.pop %v379
    %v381 = vmul.f32 %v378, 1.442695
    %v382 = vpow.pop %v381
    %v383 = vadd.f32 %v380, 1.0
    %v384 = vadd.f32 %v382, 1.0
    %v385 = vrcp.pop %v383
    %v386 = vmul.f32 1.0, %v385
    %v387 = vrcp.pop %v384
    %v388 = vmul.f32 1.0, %v387
    %v389 = vtanh.pop %v375
    %391 = vrot.lane.b32.xlu0 %v296, 64
    %v392 = vpop.permute.xlu0 %391
    %v394 = vmul.f32 %v386, %v392
    %v395 = vmul.f32 %v386, %v389
    %397 = vrot.lane.b32.xlu0 %v395, 64
    %v398 = vpop.permute.xlu0 %397
    %v400 = vadd.f32 %v394, %v398
    %v401 = vtanh.pop %v400
    %v402 = vmul.f32 %v388, %v401
    %404 = vrot.lane.b32.xlu0 %v402, 64
    %v405 = vpop.permute.xlu0 %404
    %v406 = vrot.slane %v144, 4
    %v407 = vrot.slane %v146, 4
    %v410 = vsel %vm186, %v405, 0
    %412 = vmatprep.subr.mxu0 %v155
    %413 = vmatpush1.msra.mxu0 %v154
    %414 = vmatprep.subr.mxu0 %v157
    %415 = vmatpush1.msra.mxu0 %v156
    %416 = vmatprep.subr.mxu0 %v159
    %417 = vmatpush1.msra.mxu0 %v158
    %418 = vmatprep.subr.mxu0 %v161
    %419 = vmatpush1.msra.mxu0 %v160
    %420 = vmatprep.subr.mxu0 %v163
    %421 = vmatpush1.msra.mxu0 %v162
    %422 = vmatprep.subr.mxu0 %v165
    %423 = vmatpush1.msra.mxu0 %v164
    %424 = vmatprep.subr.mxu0 %v167
    %425 = vmatpush1.msra.mxu0 %v166
    %426 = vmatprep.subr.mxu0 %v169
    %427 = vmatpush1.msra.mxu0 %v168
    %428 = vmatprep.subr.mxu0 0.0
    %429 = vmatpush1.msra.mxu0 0.0
    %430 = vmatprep.subr.mxu0 0.0
    %431 = vmatpush1.msra.mxu0 0.0
    %432 = vmatprep.subr.mxu0 0.0
    %433 = vmatpush1.msra.mxu0 0.0
    %434 = vmatprep.subr.mxu0 0.0
    %435 = vmatpush1.msra.mxu0 0.0
    %436 = vmatprep.subr.mxu0 0.0
    %437 = vmatpush1.msra.mxu0 0.0
    %438 = vmatprep.subr.mxu0 0.0
    %439 = vmatpush1.msra.mxu0 0.0
    %440 = vmatprep.subr.mxu0 0.0
    %441 = vmatpush1.msra.mxu0 0.0
    %442 = vmatprep.subr.mxu0 0.0
    %443 = vmatpush1.msra.mxu0 0.0
    %444 = vmatprep.subr.mxu0 0.0
    %445 = vmatpush1.msra.mxu0 0.0
    %446 = vmatprep.subr.mxu0 0.0
    %447 = vmatpush1.msra.mxu0 0.0
    %448 = vmatprep.subr.mxu0 0.0
    %449 = vmatpush1.msra.mxu0 0.0
    %450 = vmatprep.subr.mxu0 0.0
    %451 = vmatpush1.msra.mxu0 0.0
    %452 = vmatprep.subr.mxu0 0.0
    %453 = vmatpush1.msra.mxu0 0.0
    %454 = vmatprep.subr.mxu0 0.0
    %455 = vmatpush1.msra.mxu0 0.0
    %456 = vmatprep.subr.mxu0 0.0
    %457 = vmatpush1.msra.mxu0 0.0
    %458 = vmatprep.subr.mxu0 0.0
    %459 = vmatpush1.msra.mxu0 0.0
    %460 = vmatprep.subr.mxu0 0.0
    %461 = vmatpush1.msra.mxu0 0.0
    %462 = vmatprep.subr.mxu0 0.0
    %463 = vmatpush1.msra.mxu0 0.0
    %464 = vmatprep.subr.mxu0 0.0
    %465 = vmatpush1.msra.mxu0 0.0
    %466 = vmatprep.subr.mxu0 0.0
    %467 = vmatpush1.msra.mxu0 0.0
    %468 = vmatprep.subr.mxu0 0.0
    %469 = vmatpush1.msra.mxu0 0.0
    %470 = vmatprep.subr.mxu0 0.0
    %471 = vmatpush1.msra.mxu0 0.0
    %472 = vmatprep.subr.mxu0 0.0
    %473 = vmatpush1.msra.mxu0 0.0
    %474 = vmatprep.subr.mxu0 0.0
    %475 = vmatpush1.msra.mxu0 0.0
    %476 = vmatprep.mubr.f32.mxu0 0.0
    %477 = vmatmul.mubr.f32.gmra.mrb[0].mxu0 %v410
    %v478 = vpop.f32.mrb[0].mxu0
    %v479 = vadd.f32 %v406, %v478
    %v480 = vpop.f32.mrb[0].mxu0
    %v481 = vadd.f32 %v407, %v480
    %482 = vdwg.mxu0
    %v483 = vxor.u32 %v479, 2147483648
    %v484 = vxor.u32 %v481, 2147483648
    %v485 = vmul.f32 %v483, 1.442695
    %v486 = vpow.pop %v485
    %v487 = vmul.f32 %v484, 1.442695
    %v488 = vpow.pop %v487
    %v489 = vadd.f32 %v486, 1.0
    %v490 = vadd.f32 %v488, 1.0
    %v491 = vrcp.pop %v489
    %v492 = vmul.f32 1.0, %v491
    %v493 = vrcp.pop %v490
    %v494 = vmul.f32 1.0, %v493
    %v495 = vtanh.pop %v481
    %v496 = vmul.f32 %v492, %v400
    %v497 = vmul.f32 %v492, %v495
    %499 = vrot.lane.b32.xlu0 %v497, 64
    %v500 = vpop.permute.xlu0 %499
    %v502 = vadd.f32 %v496, %v500
    %v503 = vtanh.pop %v502
    %v504 = vmul.f32 %v494, %v503
    %506 = vrot.lane.b32.xlu0 %v504, 64
    %v507 = vpop.permute.xlu0 %506
    %v508 = vrot.slane %v144, 6
    %v509 = vrot.slane %v146, 6
    %v512 = vsel %vm186, %v507, 0
    %514 = vmatprep.subr.mxu0 %v155
    %515 = vmatpush1.msra.mxu0 %v154
    %516 = vmatprep.subr.mxu0 %v157
    %517 = vmatpush1.msra.mxu0 %v156
    %518 = vmatprep.subr.mxu0 %v159
    %519 = vmatpush1.msra.mxu0 %v158
    %520 = vmatprep.subr.mxu0 %v161
    %521 = vmatpush1.msra.mxu0 %v160
    %522 = vmatprep.subr.mxu0 %v163
    %523 = vmatpush1.msra.mxu0 %v162
    %524 = vmatprep.subr.mxu0 %v165
    %525 = vmatpush1.msra.mxu0 %v164
    %526 = vmatprep.subr.mxu0 %v167
    %527 = vmatpush1.msra.mxu0 %v166
    %528 = vmatprep.subr.mxu0 %v169
    %529 = vmatpush1.msra.mxu0 %v168
    %530 = vmatprep.subr.mxu0 0.0
    %531 = vmatpush1.msra.mxu0 0.0
    %532 = vmatprep.subr.mxu0 0.0
    %533 = vmatpush1.msra.mxu0 0.0
    %534 = vmatprep.subr.mxu0 0.0
    %535 = vmatpush1.msra.mxu0 0.0
    %536 = vmatprep.subr.mxu0 0.0
    %537 = vmatpush1.msra.mxu0 0.0
    %538 = vmatprep.subr.mxu0 0.0
    %539 = vmatpush1.msra.mxu0 0.0
    %540 = vmatprep.subr.mxu0 0.0
    %541 = vmatpush1.msra.mxu0 0.0
    %542 = vmatprep.subr.mxu0 0.0
    %543 = vmatpush1.msra.mxu0 0.0
    %544 = vmatprep.subr.mxu0 0.0
    %545 = vmatpush1.msra.mxu0 0.0
    %546 = vmatprep.subr.mxu0 0.0
    %547 = vmatpush1.msra.mxu0 0.0
    %548 = vmatprep.subr.mxu0 0.0
    %549 = vmatpush1.msra.mxu0 0.0
    %550 = vmatprep.subr.mxu0 0.0
    %551 = vmatpush1.msra.mxu0 0.0
    %552 = vmatprep.subr.mxu0 0.0
    %553 = vmatpush1.msra.mxu0 0.0
    %554 = vmatprep.subr.mxu0 0.0
    %555 = vmatpush1.msra.mxu0 0.0
    %556 = vmatprep.subr.mxu0 0.0
    %557 = vmatpush1.msra.mxu0 0.0
    %558 = vmatprep.subr.mxu0 0.0
    %559 = vmatpush1.msra.mxu0 0.0
    %560 = vmatprep.subr.mxu0 0.0
    %561 = vmatpush1.msra.mxu0 0.0
    %562 = vmatprep.subr.mxu0 0.0
    %563 = vmatpush1.msra.mxu0 0.0
    %564 = vmatprep.subr.mxu0 0.0
    %565 = vmatpush1.msra.mxu0 0.0
    %566 = vmatprep.subr.mxu0 0.0
    %567 = vmatpush1.msra.mxu0 0.0
    %568 = vmatprep.subr.mxu0 0.0
    %569 = vmatpush1.msra.mxu0 0.0
    %570 = vmatprep.subr.mxu0 0.0
    %571 = vmatpush1.msra.mxu0 0.0
    %572 = vmatprep.subr.mxu0 0.0
    %573 = vmatpush1.msra.mxu0 0.0
    %574 = vmatprep.subr.mxu0 0.0
    %575 = vmatpush1.msra.mxu0 0.0
    %576 = vmatprep.subr.mxu0 0.0
    %577 = vmatpush1.msra.mxu0 0.0
    %578 = vmatprep.mubr.f32.mxu0 0.0
    %579 = vmatmul.mubr.f32.gmra.mrb[0].mxu0 %v512
    %v580 = vpop.f32.mrb[0].mxu0
    %v581 = vadd.f32 %v508, %v580
    %v582 = vpop.f32.mrb[0].mxu0
    %v583 = vadd.f32 %v509, %v582
    %584 = vdwg.mxu0
    %v585 = vxor.u32 %v581, 2147483648
    %v586 = vxor.u32 %v583, 2147483648
    %v587 = vmul.f32 %v585, 1.442695
    %v588 = vpow.pop %v587
    %v589 = vmul.f32 %v586, 1.442695
    %v590 = vpow.pop %v589
    %v591 = vadd.f32 %v588, 1.0
    %v592 = vadd.f32 %v590, 1.0
    %v593 = vrcp.pop %v591
    %v594 = vmul.f32 1.0, %v593
    %v595 = vrcp.pop %v592
    %v596 = vmul.f32 1.0, %v595
    %v597 = vtanh.pop %v583
    %v598 = vmul.f32 %v594, %v502
    %v599 = vmul.f32 %v594, %v597
    %601 = vrot.lane.b32.xlu0 %v599, 64
    %v602 = vpop.permute.xlu0 %601
    %v604 = vadd.f32 %v598, %v602
    %v605 = vtanh.pop %v604
    %v606 = vmul.f32 %v596, %v605
    %608 = vrot.lane.b32.xlu0 %v606, 64
    %v609 = vpop.permute.xlu0 %608
    %v610 = vsel %vm186, %v609, 0
    %612 = vmatprep.subr.mxu0 %v155
    %613 = vmatpush1.msra.mxu0 %v154
    %614 = vmatprep.subr.mxu0 %v157
    %615 = vmatpush1.msra.mxu0 %v156
    %616 = vmatprep.subr.mxu0 %v159
    %617 = vmatpush1.msra.mxu0 %v158
    %618 = vmatprep.subr.mxu0 %v161
    %619 = vmatpush1.msra.mxu0 %v160
    %620 = vmatprep.subr.mxu0 %v163
    %621 = vmatpush1.msra.mxu0 %v162
    %622 = vmatprep.subr.mxu0 %v165
    %623 = vmatpush1.msra.mxu0 %v164
    %624 = vmatprep.subr.mxu0 %v167
    %625 = vmatpush1.msra.mxu0 %v166
    %626 = vmatprep.subr.mxu0 %v169
    %627 = vmatpush1.msra.mxu0 %v168
    %628 = vmatprep.subr.mxu0 0.0
    %629 = vmatpush1.msra.mxu0 0.0
    %630 = vmatprep.subr.mxu0 0.0
    %631 = vmatpush1.msra.mxu0 0.0
    %632 = vmatprep.subr.mxu0 0.0
    %633 = vmatpush1.msra.mxu0 0.0
    %634 = vmatprep.subr.mxu0 0.0
    %635 = vmatpush1.msra.mxu0 0.0
    %636 = vmatprep.subr.mxu0 0.0
    %637 = vmatpush1.msra.mxu0 0.0
    %638 = vmatprep.subr.mxu0 0.0
    %639 = vmatpush1.msra.mxu0 0.0
    %640 = vmatprep.subr.mxu0 0.0
    %641 = vmatpush1.msra.mxu0 0.0
    %642 = vmatprep.subr.mxu0 0.0
    %643 = vmatpush1.msra.mxu0 0.0
    %644 = vmatprep.subr.mxu0 0.0
    %645 = vmatpush1.msra.mxu0 0.0
    %646 = vmatprep.subr.mxu0 0.0
    %647 = vmatpush1.msra.mxu0 0.0
    %648 = vmatprep.subr.mxu0 0.0
    %649 = vmatpush1.msra.mxu0 0.0
    %650 = vmatprep.subr.mxu0 0.0
    %651 = vmatpush1.msra.mxu0 0.0
    %652 = vmatprep.subr.mxu0 0.0
    %653 = vmatpush1.msra.mxu0 0.0
    %654 = vmatprep.subr.mxu0 0.0
    %655 = vmatpush1.msra.mxu0 0.0
    %656 = vmatprep.subr.mxu0 0.0
    %657 = vmatpush1.msra.mxu0 0.0
    %658 = vmatprep.subr.mxu0 0.0
    %659 = vmatpush1.msra.mxu0 0.0
    %660 = vmatprep.subr.mxu0 0.0
    %661 = vmatpush1.msra.mxu0 0.0
    %662 = vmatprep.subr.mxu0 0.0
    %663 = vmatpush1.msra.mxu0 0.0
    %664 = vmatprep.subr.mxu0 0.0
    %665 = vmatpush1.msra.mxu0 0.0
    %666 = vmatprep.subr.mxu0 0.0
    %667 = vmatpush1.msra.mxu0 0.0
    %668 = vmatprep.subr.mxu0 0.0
    %669 = vmatpush1.msra.mxu0 0.0
    %670 = vmatprep.subr.mxu0 0.0
    %671 = vmatpush1.msra.mxu0 0.0
    %672 = vmatprep.subr.mxu0 0.0
    %673 = vmatpush1.msra.mxu0 0.0
    %674 = vmatprep.subr.mxu0 0.0
    %675 = vmatpush1.msra.mxu0 0.0
    %676 = vmatprep.mubr.f32.mxu0 0.0
    %677 = vmatmul.mubr.f32.gmra.mrb[0].mxu0 %v610
    %v678 = vpop.f32.mrb[0].mxu0
    %v679 = vadd.f32 %v150, %v678
    %v680 = vpop.f32.mrb[0].mxu0
    %v681 = vadd.f32 %v152, %v680
    %682 = vdwg.mxu0
    %v683 = vxor.u32 %v679, 2147483648
    %v684 = vxor.u32 %v681, 2147483648
    %v685 = vmul.f32 %v683, 1.442695
    %v686 = vpow.pop %v685
    %v687 = vmul.f32 %v684, 1.442695
    %v688 = vpow.pop %v687
    %v689 = vadd.f32 %v686, 1.0
    %v690 = vadd.f32 %v688, 1.0
    %v691 = vrcp.pop %v689
    %v692 = vmul.f32 1.0, %v691
    %v693 = vrcp.pop %v690
    %v694 = vmul.f32 1.0, %v693
    %v695 = vtanh.pop %v681
    %v696 = vmul.f32 %v692, %v604
    %v697 = vmul.f32 %v692, %v695
    %699 = vrot.lane.b32.xlu0 %v697, 64
    %v700 = vpop.permute.xlu0 %699
    %v702 = vadd.f32 %v696, %v700
    %v703 = vtanh.pop %v702
    %v704 = vmul.f32 %v694, %v703
    %706 = vrot.lane.b32.xlu0 %v704, 64
    %v707 = vpop.permute.xlu0 %706
    %v710 = vrot.slane %v150, 2
    %v711 = vrot.slane %v152, 2
    %v714 = vsel %vm186, %v707, 0
    %716 = vmatprep.subr.mxu0 %v155
    %717 = vmatpush1.msra.mxu0 %v154
    %718 = vmatprep.subr.mxu0 %v157
    %719 = vmatpush1.msra.mxu0 %v156
    %720 = vmatprep.subr.mxu0 %v159
    %721 = vmatpush1.msra.mxu0 %v158
    %722 = vmatprep.subr.mxu0 %v161
    %723 = vmatpush1.msra.mxu0 %v160
    %724 = vmatprep.subr.mxu0 %v163
    %725 = vmatpush1.msra.mxu0 %v162
    %726 = vmatprep.subr.mxu0 %v165
    %727 = vmatpush1.msra.mxu0 %v164
    %728 = vmatprep.subr.mxu0 %v167
    %729 = vmatpush1.msra.mxu0 %v166
    %730 = vmatprep.subr.mxu0 %v169
    %731 = vmatpush1.msra.mxu0 %v168
    %732 = vmatprep.subr.mxu0 0.0
    %733 = vmatpush1.msra.mxu0 0.0
    %734 = vmatprep.subr.mxu0 0.0
    %735 = vmatpush1.msra.mxu0 0.0
    %736 = vmatprep.subr.mxu0 0.0
    %737 = vmatpush1.msra.mxu0 0.0
    %738 = vmatprep.subr.mxu0 0.0
    %739 = vmatpush1.msra.mxu0 0.0
    %740 = vmatprep.subr.mxu0 0.0
    %741 = vmatpush1.msra.mxu0 0.0
    %742 = vmatprep.subr.mxu0 0.0
    %743 = vmatpush1.msra.mxu0 0.0
    %744 = vmatprep.subr.mxu0 0.0
    %745 = vmatpush1.msra.mxu0 0.0
    %746 = vmatprep.subr.mxu0 0.0
    %747 = vmatpush1.msra.mxu0 0.0
    %748 = vmatprep.subr.mxu0 0.0
    %749 = vmatpush1.msra.mxu0 0.0
    %750 = vmatprep.subr.mxu0 0.0
    %751 = vmatpush1.msra.mxu0 0.0
    %752 = vmatprep.subr.mxu0 0.0
    %753 = vmatpush1.msra.mxu0 0.0
    %754 = vmatprep.subr.mxu0 0.0
    %755 = vmatpush1.msra.mxu0 0.0
    %756 = vmatprep.subr.mxu0 0.0
    %757 = vmatpush1.msra.mxu0 0.0
    %758 = vmatprep.subr.mxu0 0.0
    %759 = vmatpush1.msra.mxu0 0.0
    %760 = vmatprep.subr.mxu0 0.0
    %761 = vmatpush1.msra.mxu0 0.0
    %762 = vmatprep.subr.mxu0 0.0
    %763 = vmatpush1.msra.mxu0 0.0
    %764 = vmatprep.subr.mxu0 0.0
    %765 = vmatpush1.msra.mxu0 0.0
    %766 = vmatprep.subr.mxu0 0.0
    %767 = vmatpush1.msra.mxu0 0.0
    %768 = vmatprep.subr.mxu0 0.0
    %769 = vmatpush1.msra.mxu0 0.0
    %770 = vmatprep.subr.mxu0 0.0
    %771 = vmatpush1.msra.mxu0 0.0
    %772 = vmatprep.subr.mxu0 0.0
    %773 = vmatpush1.msra.mxu0 0.0
    %774 = vmatprep.subr.mxu0 0.0
    %775 = vmatpush1.msra.mxu0 0.0
    %776 = vmatprep.subr.mxu0 0.0
    %777 = vmatpush1.msra.mxu0 0.0
    %778 = vmatprep.subr.mxu0 0.0
    %779 = vmatpush1.msra.mxu0 0.0
    %780 = vmatprep.mubr.f32.mxu0 0.0
    %781 = vmatmul.mubr.f32.gmra.mrb[0].mxu0 %v714
    %v782 = vpop.f32.mrb[0].mxu0
    %v783 = vadd.f32 %v710, %v782
    %v784 = vpop.f32.mrb[0].mxu0
    %v785 = vadd.f32 %v711, %v784
    %786 = vdwg.mxu0
    %v787 = vxor.u32 %v783, 2147483648
    %v788 = vxor.u32 %v785, 2147483648
    %v789 = vmul.f32 %v787, 1.442695
    %v790 = vpow.pop %v789
    %v791 = vmul.f32 %v788, 1.442695
    %v792 = vpow.pop %v791
    %v793 = vadd.f32 %v790, 1.0
    %v794 = vadd.f32 %v792, 1.0
    %v795 = vrcp.pop %v793
    %v796 = vmul.f32 1.0, %v795
    %v797 = vrcp.pop %v794
    %v798 = vmul.f32 1.0, %v797
    %v799 = vtanh.pop %v785
    %v800 = vmul.f32 %v796, %v702
    %v801 = vmul.f32 %v796, %v799
    %803 = vrot.lane.b32.xlu0 %v801, 64
    %v804 = vpop.permute.xlu0 %803
    %v806 = vadd.f32 %v800, %v804
    %v807 = vtanh.pop %v806
    %v808 = vmul.f32 %v798, %v807
    %810 = vrot.lane.b32.xlu0 %v808, 64
    %v811 = vpop.permute.xlu0 %810
    %v812 = vrot.slane %v150, 4
    %v813 = vrot.slane %v152, 4
    %v816 = vsel %vm186, %v811, 0
    %818 = vmatprep.subr.mxu0 %v155
    %819 = vmatpush1.msra.mxu0 %v154
    %820 = vmatprep.subr.mxu0 %v157
    %821 = vmatpush1.msra.mxu0 %v156
    %822 = vmatprep.subr.mxu0 %v159
    %823 = vmatpush1.msra.mxu0 %v158
    %824 = vmatprep.subr.mxu0 %v161
    %825 = vmatpush1.msra.mxu0 %v160
    %826 = vmatprep.subr.mxu0 %v163
    %827 = vmatpush1.msra.mxu0 %v162
    %828 = vmatprep.subr.mxu0 %v165
    %829 = vmatpush1.msra.mxu0 %v164
    %830 = vmatprep.subr.mxu0 %v167
    %831 = vmatpush1.msra.mxu0 %v166
    %832 = vmatprep.subr.mxu0 %v169
    %833 = vmatpush1.msra.mxu0 %v168
    %834 = vmatprep.subr.mxu0 0.0
    %835 = vmatpush1.msra.mxu0 0.0
    %836 = vmatprep.subr.mxu0 0.0
    %837 = vmatpush1.msra.mxu0 0.0
    %838 = vmatprep.subr.mxu0 0.0
    %839 = vmatpush1.msra.mxu0 0.0
    %840 = vmatprep.subr.mxu0 0.0
    %841 = vmatpush1.msra.mxu0 0.0
    %842 = vmatprep.subr.mxu0 0.0
    %843 = vmatpush1.msra.mxu0 0.0
    %844 = vmatprep.subr.mxu0 0.0
    %845 = vmatpush1.msra.mxu0 0.0
    %846 = vmatprep.subr.mxu0 0.0
    %847 = vmatpush1.msra.mxu0 0.0
    %848 = vmatprep.subr.mxu0 0.0
    %849 = vmatpush1.msra.mxu0 0.0
    %850 = vmatprep.subr.mxu0 0.0
    %851 = vmatpush1.msra.mxu0 0.0
    %852 = vmatprep.subr.mxu0 0.0
    %853 = vmatpush1.msra.mxu0 0.0
    %854 = vmatprep.subr.mxu0 0.0
    %855 = vmatpush1.msra.mxu0 0.0
    %856 = vmatprep.subr.mxu0 0.0
    %857 = vmatpush1.msra.mxu0 0.0
    %858 = vmatprep.subr.mxu0 0.0
    %859 = vmatpush1.msra.mxu0 0.0
    %860 = vmatprep.subr.mxu0 0.0
    %861 = vmatpush1.msra.mxu0 0.0
    %862 = vmatprep.subr.mxu0 0.0
    %863 = vmatpush1.msra.mxu0 0.0
    %864 = vmatprep.subr.mxu0 0.0
    %865 = vmatpush1.msra.mxu0 0.0
    %866 = vmatprep.subr.mxu0 0.0
    %867 = vmatpush1.msra.mxu0 0.0
    %868 = vmatprep.subr.mxu0 0.0
    %869 = vmatpush1.msra.mxu0 0.0
    %870 = vmatprep.subr.mxu0 0.0
    %871 = vmatpush1.msra.mxu0 0.0
    %872 = vmatprep.subr.mxu0 0.0
    %873 = vmatpush1.msra.mxu0 0.0
    %874 = vmatprep.subr.mxu0 0.0
    %875 = vmatpush1.msra.mxu0 0.0
    %876 = vmatprep.subr.mxu0 0.0
    %877 = vmatpush1.msra.mxu0 0.0
    %878 = vmatprep.subr.mxu0 0.0
    %879 = vmatpush1.msra.mxu0 0.0
    %880 = vmatprep.subr.mxu0 0.0
    %881 = vmatpush1.msra.mxu0 0.0
    %882 = vmatprep.mubr.f32.mxu0 0.0
    %883 = vmatmul.mubr.f32.gmra.mrb[0].mxu0 %v816
    %v884 = vpop.f32.mrb[0].mxu0
    %v885 = vadd.f32 %v812, %v884
    %v886 = vpop.f32.mrb[0].mxu0
    %v887 = vadd.f32 %v813, %v886
    %888 = vdwg.mxu0
    %v889 = vxor.u32 %v885, 2147483648
    %v890 = vxor.u32 %v887, 2147483648
    %v891 = vmul.f32 %v889, 1.442695
    %v892 = vpow.pop %v891
    %v893 = vmul.f32 %v890, 1.442695
    %v894 = vpow.pop %v893
    %v895 = vadd.f32 %v892, 1.0
    %v896 = vadd.f32 %v894, 1.0
    %v897 = vrcp.pop %v895
    %v898 = vmul.f32 1.0, %v897
    %v899 = vrcp.pop %v896
    %v900 = vmul.f32 1.0, %v899
    %v901 = vtanh.pop %v887
    %v902 = vmul.f32 %v898, %v806
    %v903 = vmul.f32 %v898, %v901
    %905 = vrot.lane.b32.xlu0 %v903, 64
    %v906 = vpop.permute.xlu0 %905
    %v908 = vadd.f32 %v902, %v906
    %v909 = vtanh.pop %v908
    %v910 = vmul.f32 %v900, %v909
    %912 = vrot.lane.b32.xlu0 %v910, 64
    %v913 = vpop.permute.xlu0 %912
    %v914 = vrot.slane %v150, 6
    %v915 = vrot.slane %v152, 6
    %v918 = vsel %vm186, %v913, 0
    %920 = vmatprep.subr.mxu0 %v155
    %921 = vmatpush1.msra.mxu0 %v154
    %922 = vmatprep.subr.mxu0 %v157
    %923 = vmatpush1.msra.mxu0 %v156
    %924 = vmatprep.subr.mxu0 %v159
    %925 = vmatpush1.msra.mxu0 %v158
    %926 = vmatprep.subr.mxu0 %v161
    %927 = vmatpush1.msra.mxu0 %v160
    %928 = vmatprep.subr.mxu0 %v163
    %929 = vmatpush1.msra.mxu0 %v162
    %930 = vmatprep.subr.mxu0 %v165
    %931 = vmatpush1.msra.mxu0 %v164
    %932 = vmatprep.subr.mxu0 %v167
    %933 = vmatpush1.msra.mxu0 %v166
    %934 = vmatprep.subr.mxu0 %v169
    %935 = vmatpush1.msra.mxu0 %v168
    %936 = vmatprep.subr.mxu0 0.0
    %937 = vmatpush1.msra.mxu0 0.0
    %938 = vmatprep.subr.mxu0 0.0
    %939 = vmatpush1.msra.mxu0 0.0
    %940 = vmatprep.subr.mxu0 0.0
    %941 = vmatpush1.msra.mxu0 0.0
    %942 = vmatprep.subr.mxu0 0.0
    %943 = vmatpush1.msra.mxu0 0.0
    %944 = vmatprep.subr.mxu0 0.0
    %945 = vmatpush1.msra.mxu0 0.0
    %946 = vmatprep.subr.mxu0 0.0
    %947 = vmatpush1.msra.mxu0 0.0
    %948 = vmatprep.subr.mxu0 0.0
    %949 = vmatpush1.msra.mxu0 0.0
    %950 = vmatprep.subr.mxu0 0.0
    %951 = vmatpush1.msra.mxu0 0.0
    %952 = vmatprep.subr.mxu0 0.0
    %953 = vmatpush1.msra.mxu0 0.0
    %954 = vmatprep.subr.mxu0 0.0
    %955 = vmatpush1.msra.mxu0 0.0
    %956 = vmatprep.subr.mxu0 0.0
    %957 = vmatpush1.msra.mxu0 0.0
    %958 = vmatprep.subr.mxu0 0.0
    %959 = vmatpush1.msra.mxu0 0.0
    %960 = vmatprep.subr.mxu0 0.0
    %961 = vmatpush1.msra.mxu0 0.0
    %962 = vmatprep.subr.mxu0 0.0
    %963 = vmatpush1.msra.mxu0 0.0
    %964 = vmatprep.subr.mxu0 0.0
    %965 = vmatpush1.msra.mxu0 0.0
    %966 = vmatprep.subr.mxu0 0.0
    %967 = vmatpush1.msra.mxu0 0.0
    %968 = vmatprep.subr.mxu0 0.0
    %969 = vmatpush1.msra.mxu0 0.0
    %970 = vmatprep.subr.mxu0 0.0
    %971 = vmatpush1.msra.mxu0 0.0
    %972 = vmatprep.subr.mxu0 0.0
    %973 = vmatpush1.msra.mxu0 0.0
    %974 = vmatprep.subr.mxu0 0.0
    %975 = vmatpush1.msra.mxu0 0.0
    %976 = vmatprep.subr.mxu0 0.0
    %977 = vmatpush1.msra.mxu0 0.0
    %978 = vmatprep.subr.mxu0 0.0
    %979 = vmatpush1.msra.mxu0 0.0
    %980 = vmatprep.subr.mxu0 0.0
    %981 = vmatpush1.msra.mxu0 0.0
    %982 = vmatprep.subr.mxu0 0.0
    %983 = vmatpush1.msra.mxu0 0.0
    %984 = vmatprep.mubr.f32.mxu0 0.0
    %985 = vmatmul.mubr.f32.gmra.mrb[0].mxu0 %v918
    %v986 = vpop.f32.mrb[0].mxu0
    %v987 = vadd.f32 %v914, %v986
    %v988 = vpop.f32.mrb[0].mxu0
    %v989 = vadd.f32 %v915, %v988
    %990 = vdwg.mxu0
    %v991 = vxor.u32 %v987, 2147483648
    %v992 = vxor.u32 %v989, 2147483648
    %v993 = vmul.f32 %v991, 1.442695
    %v994 = vpow.pop %v993
    %v995 = vmul.f32 %v992, 1.442695
    %v996 = vpow.pop %v995
    %v997 = vadd.f32 %v994, 1.0
    %v998 = vadd.f32 %v996, 1.0
    %v999 = vrcp.pop %v997
    %v1000 = vmul.f32 1.0, %v999
    %v1001 = vrcp.pop %v998
    %v1002 = vmul.f32 1.0, %v1001
    %v1003 = vtanh.pop %v989
    %v1004 = vmul.f32 %v1000, %v908
    %v1005 = vmul.f32 %v1000, %v1003
    %1007 = vrot.lane.b32.xlu0 %v1005, 64
    %v1008 = vpop.permute.xlu0 %1007
    %v1010 = vadd.f32 %v1004, %v1008
    %v1011 = vtanh.pop %v1010
    %v1012 = vmul.f32 %v1002, %v1011
    %1014 = vrot.lane.b32.xlu0 %v1012, 64
    %v1015 = vpop.permute.xlu0 %1014
    %v1016 = vsel %vm186, %v1015, 0
    %1018 = vmatprep.subr.mxu0 %v155
    %1019 = vmatpush1.msra.mxu0 %v154
    %1020 = vmatprep.subr.mxu0 %v157
    %1021 = vmatpush1.msra.mxu0 %v156
    %1022 = vmatprep.subr.mxu0 %v159
    %1023 = vmatpush1.msra.mxu0 %v158
    %1024 = vmatprep.subr.mxu0 %v161
    %1025 = vmatpush1.msra.mxu0 %v160
    %1026 = vmatprep.subr.mxu0 %v163
    %1027 = vmatpush1.msra.mxu0 %v162
    %1028 = vmatprep.subr.mxu0 %v165
    %1029 = vmatpush1.msra.mxu0 %v164
    %1030 = vmatprep.subr.mxu0 %v167
    %1031 = vmatpush1.msra.mxu0 %v166
    %1032 = vmatprep.subr.mxu0 %v169
    %1033 = vmatpush1.msra.mxu0 %v168
    %1034 = vmatprep.subr.mxu0 0.0
    %1035 = vmatpush1.msra.mxu0 0.0
    %1036 = vmatprep.subr.mxu0 0.0
    %1037 = vmatpush1.msra.mxu0 0.0
    %1038 = vmatprep.subr.mxu0 0.0
    %1039 = vmatpush1.msra.mxu0 0.0
    %1040 = vmatprep.subr.mxu0 0.0
    %1041 = vmatpush1.msra.mxu0 0.0
    %1042 = vmatprep.subr.mxu0 0.0
    %1043 = vmatpush1.msra.mxu0 0.0
    %1044 = vmatprep.subr.mxu0 0.0
    %1045 = vmatpush1.msra.mxu0 0.0
    %1046 = vmatprep.subr.mxu0 0.0
    %1047 = vmatpush1.msra.mxu0 0.0
    %1048 = vmatprep.subr.mxu0 0.0
    %1049 = vmatpush1.msra.mxu0 0.0
    %1050 = vmatprep.subr.mxu0 0.0
    %1051 = vmatpush1.msra.mxu0 0.0
    %1052 = vmatprep.subr.mxu0 0.0
    %1053 = vmatpush1.msra.mxu0 0.0
    %1054 = vmatprep.subr.mxu0 0.0
    %1055 = vmatpush1.msra.mxu0 0.0
    %1056 = vmatprep.subr.mxu0 0.0
    %1057 = vmatpush1.msra.mxu0 0.0
    %1058 = vmatprep.subr.mxu0 0.0
    %1059 = vmatpush1.msra.mxu0 0.0
    %1060 = vmatprep.subr.mxu0 0.0
    %1061 = vmatpush1.msra.mxu0 0.0
    %1062 = vmatprep.subr.mxu0 0.0
    %1063 = vmatpush1.msra.mxu0 0.0
    %1064 = vmatprep.subr.mxu0 0.0
    %1065 = vmatpush1.msra.mxu0 0.0
    %1066 = vmatprep.subr.mxu0 0.0
    %1067 = vmatpush1.msra.mxu0 0.0
    %1068 = vmatprep.subr.mxu0 0.0
    %1069 = vmatpush1.msra.mxu0 0.0
    %1070 = vmatprep.subr.mxu0 0.0
    %1071 = vmatpush1.msra.mxu0 0.0
    %1072 = vmatprep.subr.mxu0 0.0
    %1073 = vmatpush1.msra.mxu0 0.0
    %1074 = vmatprep.subr.mxu0 0.0
    %1075 = vmatpush1.msra.mxu0 0.0
    %1076 = vmatprep.subr.mxu0 0.0
    %1077 = vmatpush1.msra.mxu0 0.0
    %1078 = vmatprep.subr.mxu0 0.0
    %1079 = vmatpush1.msra.mxu0 0.0
    %1080 = vmatprep.subr.mxu0 0.0
    %1081 = vmatpush1.msra.mxu0 0.0
    %1082 = vmatprep.mubr.f32.mxu0 0.0
    %1083 = vmatmul.mubr.f32.gmra.mrb[0].mxu0 %v1016
    %v1084 = vpop.f32.mrb[0].mxu0
    %v1085 = vadd.f32 %v63, %v1084
    %v1086 = vpop.f32.mrb[0].mxu0
    %v1087 = vadd.f32 %v67, %v1086
    %1088 = vdwg.mxu0
    %v1089 = vxor.u32 %v1085, 2147483648
    %v1090 = vxor.u32 %v1087, 2147483648
    %v1091 = vmul.f32 %v1089, 1.442695
    %v1092 = vpow.pop %v1091
    %v1093 = vmul.f32 %v1090, 1.442695
    %v1094 = vpow.pop %v1093
    %v1095 = vadd.f32 %v1092, 1.0
    %v1096 = vadd.f32 %v1094, 1.0
    %v1097 = vrcp.pop %v1095
    %v1098 = vmul.f32 1.0, %v1097
    %v1099 = vrcp.pop %v1096
    %v1100 = vmul.f32 1.0, %v1099
    %v1101 = vtanh.pop %v1087
    %v1102 = vmul.f32 %v1098, %v1010
    %v1103 = vmul.f32 %v1098, %v1101
    %1105 = vrot.lane.b32.xlu0 %v1103, 64
    %v1106 = vpop.permute.xlu0 %1105
    %v1108 = vadd.f32 %v1102, %v1106
    %v1109 = vtanh.pop %v1108
    %v1110 = vmul.f32 %v1100, %v1109
    %1113 = vrot.lane.b32.xlu0 %v1110, 64
    %v1114 = vpop.permute.xlu0 %1113
    %v1116 = vsel %vm70, %v1015, %v1114
    %1118 = vrot.lane.b32.xlu0 %v1010, 64
    %v1119 = vpop.permute.xlu0 %1118
    %1122 = vrot.lane.b32.xlu0 %v1108, 64
    %v1123 = vpop.permute.xlu0 %1122
    %v1125 = vsel %vm70, %v1119, %v1123
    %v1126 = vld [vmem:[%s6] sm:$0xff]
    %v1127 = vld [vmem:[%s6 + $0x8] sm:$0xff]
    %v1128 = vld [vmem:[%s6 + $0x10] sm:$0xff]
    %v1129 = vld [vmem:[%s6 + $0x18] sm:$0xff]
    %v1130 = vld [vmem:[%s7] sm:$0x1]
    %v1132 = vlaneseq
    %v1133 = vshrl.u32 %v1132, 7
    %v1134 = vsub.s32 0, %v1133
    %v1135 = vrot.slane %v1130, %v1134
    %1138 = vrot.lane.b32.xlu0 %v1116, 96
    %v1139 = vpop.permute.xlu0 %1138
    %v1140 = vsel %vm70, %v1139, 0
    %1142 = vmatprep.subr.mxu0 0.0
    %1143 = vmatpush1.msra.mxu0 %v1126
    %1144 = vmatprep.subr.mxu0 0.0
    %1145 = vmatpush1.msra.mxu0 %v1127
    %1146 = vmatprep.subr.mxu0 0.0
    %1147 = vmatpush1.msra.mxu0 %v1128
    %1148 = vmatprep.subr.mxu0 0.0
    %1149 = vmatpush1.msra.mxu0 %v1129
    %1150 = vmatprep.subr.mxu0 0.0
    %1151 = vmatpush1.msra.mxu0 0.0
    %1152 = vmatprep.subr.mxu0 0.0
    %1153 = vmatpush1.msra.mxu0 0.0
    %1154 = vmatprep.subr.mxu0 0.0
    %1155 = vmatpush1.msra.mxu0 0.0
    %1156 = vmatprep.subr.mxu0 0.0
    %1157 = vmatpush1.msra.mxu0 0.0
    %1158 = vmatprep.subr.mxu0 0.0
    %1159 = vmatpush1.msra.mxu0 0.0
    %1160 = vmatprep.subr.mxu0 0.0
    %1161 = vmatpush1.msra.mxu0 0.0
    %1162 = vmatprep.subr.mxu0 0.0
    %1163 = vmatpush1.msra.mxu0 0.0
    %1164 = vmatprep.subr.mxu0 0.0
    %1165 = vmatpush1.msra.mxu0 0.0
    %1166 = vmatprep.subr.mxu0 0.0
    %1167 = vmatpush1.msra.mxu0 0.0
    %1168 = vmatprep.subr.mxu0 0.0
    %1169 = vmatpush1.msra.mxu0 0.0
    %1170 = vmatprep.subr.mxu0 0.0
    %1171 = vmatpush1.msra.mxu0 0.0
    %1172 = vmatprep.subr.mxu0 0.0
    %1173 = vmatpush1.msra.mxu0 0.0
    %1174 = vmatprep.subr.mxu0 0.0
    %1175 = vmatpush1.msra.mxu0 0.0
    %1176 = vmatprep.subr.mxu0 0.0
    %1177 = vmatpush1.msra.mxu0 0.0
    %1178 = vmatprep.subr.mxu0 0.0
    %1179 = vmatpush1.msra.mxu0 0.0
    %1180 = vmatprep.subr.mxu0 0.0
    %1181 = vmatpush1.msra.mxu0 0.0
    %1182 = vmatprep.subr.mxu0 0.0
    %1183 = vmatpush1.msra.mxu0 0.0
    %1184 = vmatprep.subr.mxu0 0.0
    %1185 = vmatpush1.msra.mxu0 0.0
    %1186 = vmatprep.subr.mxu0 0.0
    %1187 = vmatpush1.msra.mxu0 0.0
    %1188 = vmatprep.subr.mxu0 0.0
    %1189 = vmatpush1.msra.mxu0 0.0
    %1190 = vmatprep.subr.mxu0 0.0
    %1191 = vmatpush1.msra.mxu0 0.0
    %1192 = vmatprep.subr.mxu0 0.0
    %1193 = vmatpush1.msra.mxu0 0.0
    %1194 = vmatprep.subr.mxu0 0.0
    %1195 = vmatpush1.msra.mxu0 0.0
    %1196 = vmatprep.subr.mxu0 0.0
    %1197 = vmatpush1.msra.mxu0 0.0
    %1198 = vmatprep.subr.mxu0 0.0
    %1199 = vmatpush1.msra.mxu0 0.0
    %1200 = vmatprep.subr.mxu0 0.0
    %1201 = vmatpush1.msra.mxu0 0.0
    %1202 = vmatprep.subr.mxu0 0.0
    %1203 = vmatpush1.msra.mxu0 0.0
    %1204 = vmatprep.subr.mxu0 0.0
    %1205 = vmatpush1.msra.mxu0 0.0
    %1206 = vmatprep.mubr.f32.mxu0 0.0
    %1207 = vmatmul.mubr.f32.gmra.mrb[0].mxu0 %v1140
    %v1208 = vpop.f32.mrb[0].mxu0
    %v1209 = vadd.f32 %v1135, %v1208
    %v1210 = vpop.f32.mrb[0].mxu0
    %1211 = vdwg.mxu0
    %v1212 = vld [vmem:[%s8] sm:$0xff]
    %v1213 = vld [vmem:[%s8 + $0x8] sm:$0xff]
    %v1214 = vld [vmem:[%s8 + $0x10] sm:$0xff]
    %v1215 = vld [vmem:[%s8 + $0x18] sm:$0xff]
    %v1216 = vld [vmem:[%s8 + $0x20] sm:$0xff]
    %v1217 = vld [vmem:[%s8 + $0x28] sm:$0xff]
    %v1218 = vld [vmem:[%s8 + $0x30] sm:$0xff]
    %v1219 = vld [vmem:[%s8 + $0x38] sm:$0xff]
    %v1220 = vld [vmem:[%s9] sm:$0x1]
    %v1222 = vlaneseq
    %v1223 = vshrl.u32 %v1222, 7
    %v1224 = vsub.s32 0, %v1223
    %v1225 = vrot.slane %v1220, %v1224
    %v1228 = vsel %vm186, %v1209, 0
    %1230 = vmatprep.subr.mxu0 0.0
    %1231 = vmatpush1.msra.mxu0 %v1212
    %1232 = vmatprep.subr.mxu0 0.0
    %1233 = vmatpush1.msra.mxu0 %v1213
    %1234 = vmatprep.subr.mxu0 0.0
    %1235 = vmatpush1.msra.mxu0 %v1214
    %1236 = vmatprep.subr.mxu0 0.0
    %1237 = vmatpush1.msra.mxu0 %v1215
    %1238 = vmatprep.subr.mxu0 0.0
    %1239 = vmatpush1.msra.mxu0 %v1216
    %1240 = vmatprep.subr.mxu0 0.0
    %1241 = vmatpush1.msra.mxu0 %v1217
    %1242 = vmatprep.subr.mxu0 0.0
    %1243 = vmatpush1.msra.mxu0 %v1218
    %1244 = vmatprep.subr.mxu0 0.0
    %1245 = vmatpush1.msra.mxu0 %v1219
    %1246 = vmatprep.subr.mxu0 0.0
    %1247 = vmatpush1.msra.mxu0 0.0
    %1248 = vmatprep.subr.mxu0 0.0
    %1249 = vmatpush1.msra.mxu0 0.0
    %1250 = vmatprep.subr.mxu0 0.0
    %1251 = vmatpush1.msra.mxu0 0.0
    %1252 = vmatprep.subr.mxu0 0.0
    %1253 = vmatpush1.msra.mxu0 0.0
    %1254 = vmatprep.subr.mxu0 0.0
    %1255 = vmatpush1.msra.mxu0 0.0
    %1256 = vmatprep.subr.mxu0 0.0
    %1257 = vmatpush1.msra.mxu0 0.0
    %1258 = vmatprep.subr.mxu0 0.0
    %1259 = vmatpush1.msra.mxu0 0.0
    %1260 = vmatprep.subr.mxu0 0.0
    %1261 = vmatpush1.msra.mxu0 0.0
    %1262 = vmatprep.subr.mxu0 0.0
    %1263 = vmatpush1.msra.mxu0 0.0
    %1264 = vmatprep.subr.mxu0 0.0
    %1265 = vmatpush1.msra.mxu0 0.0
    %1266 = vmatprep.subr.mxu0 0.0
    %1267 = vmatpush1.msra.mxu0 0.0
    %1268 = vmatprep.subr.mxu0 0.0
    %1269 = vmatpush1.msra.mxu0 0.0
    %1270 = vmatprep.subr.mxu0 0.0
    %1271 = vmatpush1.msra.mxu0 0.0
    %1272 = vmatprep.subr.mxu0 0.0
    %1273 = vmatpush1.msra.mxu0 0.0
    %1274 = vmatprep.subr.mxu0 0.0
    %1275 = vmatpush1.msra.mxu0 0.0
    %1276 = vmatprep.subr.mxu0 0.0
    %1277 = vmatpush1.msra.mxu0 0.0
    %1278 = vmatprep.subr.mxu0 0.0
    %1279 = vmatpush1.msra.mxu0 0.0
    %1280 = vmatprep.subr.mxu0 0.0
    %1281 = vmatpush1.msra.mxu0 0.0
    %1282 = vmatprep.subr.mxu0 0.0
    %1283 = vmatpush1.msra.mxu0 0.0
    %1284 = vmatprep.subr.mxu0 0.0
    %1285 = vmatpush1.msra.mxu0 0.0
    %1286 = vmatprep.subr.mxu0 0.0
    %1287 = vmatpush1.msra.mxu0 0.0
    %1288 = vmatprep.subr.mxu0 0.0
    %1289 = vmatpush1.msra.mxu0 0.0
    %1290 = vmatprep.subr.mxu0 0.0
    %1291 = vmatpush1.msra.mxu0 0.0
    %1292 = vmatprep.subr.mxu0 0.0
    %1293 = vmatpush1.msra.mxu0 0.0
    %1294 = vmatprep.mubr.f32.mxu0 0.0
    %1295 = vmatmul.mubr.f32.gmra.mrb[0].mxu0 %v1228
    %v1296 = vpop.f32.mrb[0].mxu0
    %v1297 = vadd.f32 %v1225, %v1296
    %v1298 = vpop.f32.mrb[0].mxu0
    %1299 = vdwg.mxu0
    %v1300 = vld [vmem:[%s10] sm:$0xff]
    %v1301 = vld [vmem:[%s10 + $0x8] sm:$0xff]
    %v1302 = vld [vmem:[#allocation2] sm:$0x1]
    %v1304 = vlaneseq
    %v1305 = vshrl.u32 %v1304, 7
    %v1306 = vsub.s32 0, %v1305
    %v1307 = vrot.slane %v1302, %v1306
    %vm1309 = vcmask 130048
    %v1311 = vsel %vm1309, %v1297, 0
    %1313 = vmatprep.subr.mxu0 0.0
    %1314 = vmatpush1.msra.mxu0 %v1300
    %1315 = vmatprep.subr.mxu0 0.0
    %1316 = vmatpush1.msra.mxu0 %v1301
    %1317 = vmatprep.subr.mxu0 0.0
    %1318 = vmatpush1.msra.mxu0 0.0
    %1319 = vmatprep.subr.mxu0 0.0
    %1320 = vmatpush1.msra.mxu0 0.0
    %1321 = vmatprep.subr.mxu0 0.0
    %1322 = vmatpush1.msra.mxu0 0.0
    %1323 = vmatprep.subr.mxu0 0.0
    %1324 = vmatpush1.msra.mxu0 0.0
    %1325 = vmatprep.subr.mxu0 0.0
    %1326 = vmatpush1.msra.mxu0 0.0
    %1327 = vmatprep.subr.mxu0 0.0
    %1328 = vmatpush1.msra.mxu0 0.0
    %1329 = vmatprep.subr.mxu0 0.0
    %1330 = vmatpush1.msra.mxu0 0.0
    %1331 = vmatprep.subr.mxu0 0.0
    %1332 = vmatpush1.msra.mxu0 0.0
    %1333 = vmatprep.subr.mxu0 0.0
    %1334 = vmatpush1.msra.mxu0 0.0
    %1335 = vmatprep.subr.mxu0 0.0
    %1336 = vmatpush1.msra.mxu0 0.0
    %1337 = vmatprep.subr.mxu0 0.0
    %1338 = vmatpush1.msra.mxu0 0.0
    %1339 = vmatprep.subr.mxu0 0.0
    %1340 = vmatpush1.msra.mxu0 0.0
    %1341 = vmatprep.subr.mxu0 0.0
    %1342 = vmatpush1.msra.mxu0 0.0
    %1343 = vmatprep.subr.mxu0 0.0
    %1344 = vmatpush1.msra.mxu0 0.0
    %1345 = vmatprep.subr.mxu0 0.0
    %1346 = vmatpush1.msra.mxu0 0.0
    %1347 = vmatprep.subr.mxu0 0.0
    %1348 = vmatpush1.msra.mxu0 0.0
    %1349 = vmatprep.subr.mxu0 0.0
    %1350 = vmatpush1.msra.mxu0 0.0
    %1351 = vmatprep.subr.mxu0 0.0
    %1352 = vmatpush1.msra.mxu0 0.0
    %1353 = vmatprep.subr.mxu0 0.0
    %1354 = vmatpush1.msra.mxu0 0.0
    %1355 = vmatprep.subr.mxu0 0.0
    %1356 = vmatpush1.msra.mxu0 0.0
    %1357 = vmatprep.subr.mxu0 0.0
    %1358 = vmatpush1.msra.mxu0 0.0
    %1359 = vmatprep.subr.mxu0 0.0
    %1360 = vmatpush1.msra.mxu0 0.0
    %1361 = vmatprep.subr.mxu0 0.0
    %1362 = vmatpush1.msra.mxu0 0.0
    %1363 = vmatprep.subr.mxu0 0.0
    %1364 = vmatpush1.msra.mxu0 0.0
    %1365 = vmatprep.subr.mxu0 0.0
    %1366 = vmatpush1.msra.mxu0 0.0
    %1367 = vmatprep.subr.mxu0 0.0
    %1368 = vmatpush1.msra.mxu0 0.0
    %1369 = vmatprep.subr.mxu0 0.0
    %1370 = vmatpush1.msra.mxu0 0.0
    %1371 = vmatprep.subr.mxu0 0.0
    %1372 = vmatpush1.msra.mxu0 0.0
    %1373 = vmatprep.subr.mxu0 0.0
    %1374 = vmatpush1.msra.mxu0 0.0
    %1375 = vmatprep.subr.mxu0 0.0
    %1376 = vmatpush1.msra.mxu0 0.0
    %1377 = vmatprep.mubr.f32.mxu0 0.0
    %1378 = vmatmul.mubr.f32.gmra.mrb[0].mxu0 %v1311
    %v1379 = vpop.f32.mrb[0].mxu0
    %v1380 = vadd.f32 %v1307, %v1379
    %v1381 = vpop.f32.mrb[0].mxu0
    %1382 = vdwg.mxu0
    %v1383 = vxor.u32 %v1380, 2147483648
    %v1384 = vmul.f32 %v1383, 1.442695
    %v1385 = vpow.pop %v1384
    %v1386 = vadd.f32 %v1385, 1.0
    %v1387 = vrcp.pop %v1386
    %v1388 = vmul.f32 1.0, %v1387
    %vm1389 = vcmask 1024
    %1390 = vst.msk [vmem:[%s12] sm:$0x3] %vm1389, %v1388
    %vm1391 = vcmask 254976
    %1392 = vst.msk [vmem:[#allocation3] sm:$0x3] %vm1391, %v1116
    %s1394 = scalar_lea.vmem [#allocation3], 2
    %1395 = vst.msk [vmem:[%s1394] sm:$0x3] %vm1391, %v1139
    %1396 = vst.msk [vmem:[#allocation5] sm:$0x3] %vm1391, %v1125
    %1398 = vrot.lane.b32.xlu0 %v1125, 96
    %v1399 = vpop.permute.xlu0 %1398
    %s1401 = scalar_lea.vmem [#allocation5], 2
    %1402 = vst.msk [vmem:[%s1401] sm:$0x3] %vm1391, %v1399
    // Predicated region
    $region50: #{sentimental_lstm_forward.1} parent=1 // pred_check
      _
    $region51: #{sentimental_lstm_forward.1} parent=1 // pred_check_branch
      %1404 = sbr.rel (0) target = $region53
    $region52: #{sentimental_lstm_forward.1} parent=1 // pred_region
      _
    $region53: #{sentimental_lstm_forward.1} parent=1 // pred_fallthru
      _
    // Predicated region
    $region54: #{sentimental_lstm_forward.1} parent=1 // pred_check
      _
    $region55: #{sentimental_lstm_forward.1} parent=1 // pred_check_branch
      %1406 = sbr.rel (0) target = $region57
    $region56: #{sentimental_lstm_forward.1} parent=1 // pred_region
      %s1408 = ssub.s32 64, 64
      %1409 = vsyncadd [#allocation4], %s1408
      %s1410 = sshll.u32 [#allocation3], 4
      %s1411 = int_to_ptr.vmem [resolvable:$true] %s1410
      %1416 = dma.vmem_to_hbm [thread:$0]  %s1411, 64, %s13, [#allocation4], 32, 32, 2
    $region57: #{sentimental_lstm_forward.1} parent=1 // pred_fallthru
      _
    // Predicated region
    $region58: #{sentimental_lstm_forward.1} parent=1 // pred_check
      _
    $region59: #{sentimental_lstm_forward.1} parent=1 // pred_check_branch
      %1418 = sbr.rel (0) target = $region61
    $region60: #{sentimental_lstm_forward.1} parent=1 // pred_region
      %s1420 = ssub.s32 64, 64
      %1421 = vsyncadd [#allocation6], %s1420
      %s1422 = sshll.u32 [#allocation5], 4
      %s1423 = int_to_ptr.vmem [resolvable:$true] %s1422
      %1428 = dma.vmem_to_hbm [thread:$0]  %s1423, 64, %s14, [#allocation6], 32, 32, 2
    $region61: #{sentimental_lstm_forward.1} parent=1 // pred_fallthru
      _
    // Predicated region
    $region62: #{sentimental_lstm_forward.1} parent=1 // pred_check
      _
    $region63: #{sentimental_lstm_forward.1} parent=1 // pred_check_branch
      %1430 = sbr.rel (0) target = $region65
    $region64: #{sentimental_lstm_forward.1} parent=1 // pred_region
      _
    $region65: #{sentimental_lstm_forward.1} parent=1 // pred_fallthru
      _
    // Predicated region
    $region66: #{sentimental_lstm_forward.1} parent=1 // pred_check
      _
    $region67: #{sentimental_lstm_forward.1} parent=1 // pred_check_branch
      %1432 = sbr.rel (0) target = $region69
    $region68: #{sentimental_lstm_forward.1} parent=1 // pred_region
      %1433 = dma.done [#allocation4], 64
    $region69: #{sentimental_lstm_forward.1} parent=1 // pred_fallthru
      _
    // Predicated region
    $region70: #{sentimental_lstm_forward.1} parent=1 // pred_check
      _
    $region71: #{sentimental_lstm_forward.1} parent=1 // pred_check_branch
      %1435 = sbr.rel (0) target = $region73
    $region72: #{sentimental_lstm_forward.1} parent=1 // pred_region
      %1436 = dma.done [#allocation6], 64
    $region73: #{sentimental_lstm_forward.1} parent=1 // pred_fallthru
      _
    %1437 = vsyncpa [#allocation4], 1
    %1438 = vsyncpa [#allocation6], 1

</llo_original>
